<compile_context>
chip_gen: v6e
topology: v6e:2x2x1
jax: 0.10.0
libtpu: 0.0.40
codegen_flags: <defaults>
</compile_context>

<pallas_src>
import functools

import numpy as np

import jax
import jax.numpy as jnp
from jax.experimental import pallas as pl
from jax.experimental.pallas import tpu as pltpu

_TOP_PAD = 8    # zero rows above the image block (keeps shifted reads aligned/in-bounds)
_TAIL_PAD = 8   # zero rows below the image block


def _cdiv(a, b):
    return -(-a // b)


def _round_up(x, m):
    return ((x + m - 1) // m) * m


def _dense_block_kernel(x_ref, w_ref, b_ref, mask_ref, o_ref, feat,
                        *, layer_cins, Wp):
    """One grid step: run the full dense block for one group of images.

    x_ref   : (1, M_tot, K)      f32  packed, zero-padded input (K = C_final*Wp)
    w_ref   : (L, 3, Kc_max, Kg) bf16 banded per-layer weights
    b_ref   : (L, 1, Kg)         f32  bias scattered onto interior-w lanes
    mask_ref: (M_body, 1)        f32  1.0 on valid interior rows, 0.0 on halo/pad rows
    o_ref   : (1, M_body, K)          packed output slab (wrapper unpacks)
    feat    : (M_tot, K)         f32  resident growing feature map (VMEM scratch)
    """
    M_body = o_ref.shape[1]
    Kg = b_ref.shape[2]

    feat[...] = x_ref[0]
    mask = mask_ref[...]

    for i, cin in enumerate(layer_cins):          # dense layers are sequential
        kc = cin * Wp                             # live (already produced) lanes
        # 3x3 conv = 3 row-shifted banded matmuls, chained into one f32 acc.
        acc = jnp.dot(
            feat[_TOP_PAD - 1:_TOP_PAD - 1 + M_body, :kc].astype(jnp.bfloat16),
            w_ref[i, 0, :kc, :], preferred_element_type=jnp.float32)
        acc = acc + jnp.dot(
            feat[_TOP_PAD:_TOP_PAD + M_body, :kc].astype(jnp.bfloat16),
            w_ref[i, 1, :kc, :], preferred_element_type=jnp.float32)
        acc = acc + jnp.dot(
            feat[_TOP_PAD + 1:_TOP_PAD + 1 + M_body, :kc].astype(jnp.bfloat16),
            w_ref[i, 2, :kc, :], preferred_element_type=jnp.float32)
        # bias + ReLU in f32; the row mask zeroes halo/pad rows so the dense
        # concat is a plain sublane-aligned store into the new channel band.
        new = mask * jnp.maximum(acc + b_ref[i], 0.0)
        feat[_TOP_PAD:_TOP_PAD + M_body, kc:kc + Kg] = new

    # single aligned, lane-dense store of the whole packed slab
    o_ref[0] = feat[_TOP_PAD:_TOP_PAD + M_body, :].astype(o_ref.dtype)


def _grid_policy(N, Hp):
    """Fill the MXU M dimension with several images per step, but keep >=2
    parallel grid steps when N >= 2 so both v7x TensorCores get work."""
    imgs_per_step = max(1, min(_cdiv(N, 2), _cdiv(128, Hp)))
    n_steps = _cdiv(N, imgs_per_step)
    return imgs_per_step, n_steps


def _pack_weights_np(params, C0, G, L, W, Wp, Kc_max, Kg):
    """Banded weight/bias packing (numpy — static, no traced scatter graph).

    Channel-major lane packing: lane = c*Wp + w'; interior columns at band
    offsets [0, W), the two zero halo columns (x = -1 and x = W) at the band
    tail.  The dx shift is encoded purely in the weight ROW index, so
    BW[dy, ci*Wp + src(wo+dx-1), co*Wp + wo] = w[dy, dx, ci, co].
    """
    w_all = np.zeros((L, 3, Kc_max, Kg), np.float32)
    b_all = np.zeros((L, 1, Kg), np.float32)
    for i, (w, b) in enumerate(params):
        cin = C0 + i * G
        w_np = np.asarray(w, np.float32)          # (3, 3, cin, G) HWIO
        b_np = np.asarray(b, np.float32)          # (G,)
        BW = w_all[i]                             # view (3, Kc_max, Kg)
        for dx in range(3):
            for wo in range(W):
                xs = wo + dx - 1                  # source x-coordinate
                src = xs if 0 <= xs < W else (W if xs < 0 else W + 1)
                rows = np.arange(cin) * Wp + src
                cols = np.arange(G) * Wp + wo
                BW[:, rows[:, None], cols[None, :]] = w_np[:, dx]
        for co in range(G):
            b_all[i, 0, co * Wp:co * Wp + W] = b_np[co]
    return w_all, b_all


def single_block_forward(x_nchw, params):
    """Forward pass of SingleBlock.  Input/output layout: NCHW (PyTorch)."""
    N, C0, H, W = x_nchw.shape
    L = len(params)
    G = params[0][1].shape[0]
    C_final = C0 + L * G
    Hp, Wp = H + 2, W + 2
    K = C_final * Wp
    Kg = G * Wp
    Kc_max = (C0 + (L - 1) * G) * Wp

    imgs_per_step, n_steps = _grid_policy(N, Hp)
    N_pad = imgs_per_step * n_steps
    R = imgs_per_step * Hp                       # real image rows per step
    M_body = _round_up(R, 8)                     # rows each matmul covers
    M_tot = _TOP_PAD + M_body + _TAIL_PAD        # resident feature-map rows

    # ---- layout plumbing (wrapper side) ----------------------------------
    xf = x_nchw.astype(jnp.float32)
    if N_pad != N:
        xf = jnp.pad(xf, ((0, N_pad - N), (0, 0), (0, 0), (0, 0)))
    buf = jnp.zeros((N_pad, Hp, C_final, Wp), jnp.float32)
    buf = buf.at[:, 1:H + 1, :C0, :W].set(jnp.transpose(xf, (0, 2, 1, 3)))
    buf = buf.reshape(n_steps, R, K)
    x_packed = jnp.pad(buf, ((0, 0), (_TOP_PAD, M_tot - _TOP_PAD - R), (0, 0)))

    # banded weights / bias / row mask are static -> numpy, packed once.
    w_np, b_np = _pack_weights_np(params, C0, G, L, W, Wp, Kc_max, Kg)
    w_all = jnp.asarray(w_np).astype(jnp.bfloat16)   # MXU operands in bf16
    b_all = jnp.asarray(b_np)                        # bias/ReLU math stays f32

    mask_np = np.zeros((M_body, 1), np.float32)
    for n in range(imgs_per_step):
        mask_np[n * Hp + 1:n * Hp + 1 + H, 0] = 1.0
    row_mask = jnp.asarray(mask_np)

    layer_cins = tuple(C0 + i * G for i in range(L))
    kernel = functools.partial(_dense_block_kernel,
                               layer_cins=layer_cins, Wp=Wp)

    out_packed = pl.pallas_call(
        kernel,
        out_shape=jax.ShapeDtypeStruct((n_steps, M_body, K), jnp.float32),
        grid_spec=pltpu.PrefetchScalarGridSpec(
            num_scalar_prefetch=0,
            grid=(n_steps,),
            in_specs=[
                pl.BlockSpec((1, M_tot, K), lambda s: (s, 0, 0)),
                pl.BlockSpec((L, 3, Kc_max, Kg), lambda s: (0, 0, 0, 0)),
                pl.BlockSpec((L, 1, Kg), lambda s: (0, 0, 0)),
                pl.BlockSpec((M_body, 1), lambda s: (0, 0)),
            ],
            out_specs=pl.BlockSpec((1, M_body, K), lambda s: (s, 0, 0)),
            scratch_shapes=[pltpu.VMEM((M_tot, K), jnp.float32)],
        ),
        compiler_params=pltpu.CompilerParams(
            dimension_semantics=("parallel",),
        ),
    )(x_packed, w_all, b_all, row_mask)

    # unpack: (n_steps, M_body, K) -> (N, C_final, H, W)
    out = out_packed[:, :R, :].reshape(N_pad, Hp, C_final, Wp)
    out = out[:N, 1:H + 1, :, :W]                # drop halos / padded images
    return jnp.transpose(out, (0, 2, 1, 3)).astype(x_nchw.dtype)


def init_single_block_params(key, in_channels, growth_rate, n_dense_layer):
    """Deterministic parameter init matching SingleBlock's layer shapes."""
    params = []
    c = in_channels
    for _ in range(n_dense_layer):
        key, wk, bk = jax.random.split(key, 3)
        fan_in = c * 3 * 3
        bound = 1.0 / jnp.sqrt(fan_in)
        # HWIO weights (PyTorch OIHW (growth, c, 3, 3) transposed)
        w = jax.random.uniform(wk, (3, 3, c, growth_rate), jnp.float32,
                               -bound, bound)
        b = jax.random.uniform(bk, (growth_rate,), jnp.float32, -bound, bound)
        params.append((w, b))
        c += growth_rate
    return params


def _reference_forward(x_nchw, params):
    """Pure-JAX reference (lax.conv) for correctness checking."""
    x = x_nchw
    for (w, b) in params:
        y = jax.lax.conv_general_dilated(
            x, w, window_strides=(1, 1), padding=((1, 1), (1, 1)),
            dimension_numbers=("NCHW", "HWIO", "NCHW"))
        y = jnp.maximum(y + b.reshape(1, -1, 1, 1), 0.0)
        x = jnp.concatenate([x, y], axis=1)
    return x


if __name__ == "__main__":
    key = jax.random.PRNGKey(0)
    xk, pk = jax.random.split(key)

    N, C, H, W = 2, 4, 16, 16
    growth_rate = 4
    n_dense_layer = 3

    x = jax.random.normal(xk, (N, C, H, W), jnp.float32)
    params = init_single_block_params(pk, C, growth_rate, n_dense_layer)

    out = single_block_forward(x, params)
    out = jax.block_until_ready(out)

    expected_channels = C + growth_rate * n_dense_layer
    assert out.shape == (N, expected_channels, H, W), out.shape
    ref = _reference_forward(x, params)
    # bf16 MXU operands (f32 accumulation) -> loosened tolerance.
    assert jnp.allclose(out, ref, rtol=5e-2, atol=5e-2), \
        float(jnp.max(jnp.abs(out - ref)))

    print("KERNEL_OK")
</pallas_src>

<mosaic_0001>
module attributes {stable_mosaic.version = 11 : i64} {
  func.func @_dense_block_kernel(%arg0: i32, %arg1: memref<1x40x288xf32, #tpu.memory_space<vmem>>, %arg2: memref<3x3x216x72xbf16, #tpu.memory_space<vmem>>, %arg3: memref<3x1x72xf32, #tpu.memory_space<vmem>>, %arg4: memref<24x1xf32, #tpu.memory_space<vmem>>, %arg5: memref<1x24x288xf32, #tpu.memory_space<vmem>>, %arg6: memref<40x288xf32, #tpu.memory_space<vmem>>) attributes {dimension_semantics = [#tpu.dimension_semantics<parallel>], iteration_bounds = array<i64: 2>, scalar_prefetch = 0 : i64, scratch_operands = 1 : i64, tpu.core_type = #tpu.core_type<tc>, window_params = [{transform_indices = @transform_0, window_bounds = array<i64: 1, 40, 288>}, {pipeline_mode = #tpu.pipeline_mode<synchronous>, transform_indices = @transform_1, window_bounds = array<i64: 3, 3, 216, 72>}, {pipeline_mode = #tpu.pipeline_mode<synchronous>, transform_indices = @transform_2, window_bounds = array<i64: 3, 1, 72>}, {pipeline_mode = #tpu.pipeline_mode<synchronous>, transform_indices = @transform_3, window_bounds = array<i64: 24, 1>}, {transform_indices = @transform_4, window_bounds = array<i64: 1, 24, 288>}]} {
    %c0 = arith.constant 0 : index
    %c0_0 = arith.constant 0 : index
    %c0_1 = arith.constant 0 : index
    %0 = vector.load %arg1[%c0, %c0_0, %c0_1] : memref<1x40x288xf32, #tpu.memory_space<vmem>>, vector<1x40x288xf32>
    %1 = vector.shape_cast %0 : vector<1x40x288xf32> to vector<40x288xf32>
    %c0_2 = arith.constant 0 : index
    %c0_3 = arith.constant 0 : index
    %2 = vector.load %arg6[%c0_2, %c0_3] : memref<40x288xf32, #tpu.memory_space<vmem>>, vector<40x288xf32>
    tpu.vector_store %arg6[%c0_2, %c0_3], %1 {strides = array<i32>} : memref<40x288xf32, #tpu.memory_space<vmem>>, vector<40x288xf32>,
    %c0_4 = arith.constant 0 : index
    %c0_5 = arith.constant 0 : index
    %3 = vector.load %arg4[%c0_4, %c0_5] : memref<24x1xf32, #tpu.memory_space<vmem>>, vector<24x1xf32>
    %c7 = arith.constant 7 : index
    %c0_6 = arith.constant 0 : index
    %4 = vector.load %arg6[%c7, %c0_6] : memref<40x288xf32, #tpu.memory_space<vmem>>, vector<24x72xf32>
    %5 = arith.truncf %4 : vector<24x72xf32> to vector<24x72xbf16>
    %c0_7 = arith.constant 0 : index
    %c0_8 = arith.constant 0 : index
    %c0_9 = arith.constant 0 : index
    %c0_10 = arith.constant 0 : index
    %6 = vector.load %arg2[%c0_7, %c0_8, %c0_9, %c0_10] : memref<3x3x216x72xbf16, #tpu.memory_space<vmem>>, vector<1x1x72x72xbf16>
    %7 = vector.shape_cast %6 : vector<1x1x72x72xbf16> to vector<72x72xbf16>
    %cst = arith.constant dense<0.000000e+00> : vector<24x72xf32>
    %8 = tpu.matmul %5, %7, %cst {dimension_numbers = #tpu.dot_dimension_numbers<[1], [0], [0], [1], [0, 0, 1, 1], [], []>} : vector<24x72xbf16>, vector<72x72xbf16>, vector<24x72xf32> -> vector<24x72xf32>
    %c8 = arith.constant 8 : index
    %c0_11 = arith.constant 0 : index
    %9 = vector.load %arg6[%c8, %c0_11] : memref<40x288xf32, #tpu.memory_space<vmem>>, vector<24x72xf32>
    %10 = arith.truncf %9 : vector<24x72xf32> to vector<24x72xbf16>
    %c0_12 = arith.constant 0 : index
    %c1 = arith.constant 1 : index
    %c0_13 = arith.constant 0 : index
    %c0_14 = arith.constant 0 : index
    %11 = vector.load %arg2[%c0_12, %c1, %c0_13, %c0_14] : memref<3x3x216x72xbf16, #tpu.memory_space<vmem>>, vector<1x1x72x72xbf16>
    %12 = vector.shape_cast %11 : vector<1x1x72x72xbf16> to vector<72x72xbf16>
    %cst_15 = arith.constant dense<0.000000e+00> : vector<24x72xf32>
    %13 = tpu.matmul %10, %12, %cst_15 {dimension_numbers = #tpu.dot_dimension_numbers<[1], [0], [0], [1], [0, 0, 1, 1], [], []>} : vector<24x72xbf16>, vector<72x72xbf16>, vector<24x72xf32> -> vector<24x72xf32>
    %14 = arith.addf %8, %13 : vector<24x72xf32>
    %c9 = arith.constant 9 : index
    %c0_16 = arith.constant 0 : index
    %15 = vector.load %arg6[%c9, %c0_16] : memref<40x288xf32, #tpu.memory_space<vmem>>, vector<24x72xf32>
    %16 = arith.truncf %15 : vector<24x72xf32> to vector<24x72xbf16>
    %c0_17 = arith.constant 0 : index
    %c2 = arith.constant 2 : index
    %c0_18 = arith.constant 0 : index
    %c0_19 = arith.constant 0 : index
    %17 = vector.load %arg2[%c0_17, %c2, %c0_18, %c0_19] : memref<3x3x216x72xbf16, #tpu.memory_space<vmem>>, vector<1x1x72x72xbf16>
    %18 = vector.shape_cast %17 : vector<1x1x72x72xbf16> to vector<72x72xbf16>
    %cst_20 = arith.constant dense<0.000000e+00> : vector<24x72xf32>
    %19 = tpu.matmul %16, %18, %cst_20 {dimension_numbers = #tpu.dot_dimension_numbers<[1], [0], [0], [1], [0, 0, 1, 1], [], []>} : vector<24x72xbf16>, vector<72x72xbf16>, vector<24x72xf32> -> vector<24x72xf32>
    %20 = arith.addf %14, %19 : vector<24x72xf32>
    %c0_21 = arith.constant 0 : index
    %c0_22 = arith.constant 0 : index
    %c0_23 = arith.constant 0 : index
    %21 = vector.load %arg3[%c0_21, %c0_22, %c0_23] : memref<3x1x72xf32, #tpu.memory_space<vmem>>, vector<1x1x72xf32>
    %22 = vector.shape_cast %21 : vector<1x1x72xf32> to vector<1x72xf32>
    %23 = vector.broadcast %22 : vector<1x72xf32> to vector<24x72xf32>
    %24 = arith.addf %20, %23 : vector<24x72xf32>
    %cst_24 = arith.constant 0.000000e+00 : f32
    %25 = vector.broadcast %cst_24 : f32 to vector<24x72xf32>
    %26 = arith.maximumf %24, %25 : vector<24x72xf32>
    %27 = vector.broadcast %3 : vector<24x1xf32> to vector<24x72xf32>
    %28 = arith.mulf %27, %26 : vector<24x72xf32>
    %c8_25 = arith.constant 8 : index
    %c72 = arith.constant 72 : index
    %29 = vector.load %arg6[%c8_25, %c72] : memref<40x288xf32, #tpu.memory_space<vmem>>, vector<24x72xf32>
    tpu.vector_store %arg6[%c8_25, %c72], %28 {strides = array<i32>} : memref<40x288xf32, #tpu.memory_space<vmem>>, vector<24x72xf32>,
    %c7_26 = arith.constant 7 : index
    %c0_27 = arith.constant 0 : index
    %30 = vector.load %arg6[%c7_26, %c0_27] : memref<40x288xf32, #tpu.memory_space<vmem>>, vector<24x144xf32>
    %31 = arith.truncf %30 : vector<24x144xf32> to vector<24x144xbf16>
    %c1_28 = arith.constant 1 : index
    %c0_29 = arith.constant 0 : index
    %c0_30 = arith.constant 0 : index
    %c0_31 = arith.constant 0 : index
    %32 = vector.load %arg2[%c1_28, %c0_29, %c0_30, %c0_31] : memref<3x3x216x72xbf16, #tpu.memory_space<vmem>>, vector<1x1x144x72xbf16>
    %33 = vector.shape_cast %32 : vector<1x1x144x72xbf16> to vector<144x72xbf16>
    %cst_32 = arith.constant dense<0.000000e+00> : vector<24x72xf32>
    %34 = tpu.matmul %31, %33, %cst_32 {dimension_numbers = #tpu.dot_dimension_numbers<[1], [0], [0], [1], [0, 0, 1, 1], [], []>} : vector<24x144xbf16>, vector<144x72xbf16>, vector<24x72xf32> -> vector<24x72xf32>
    %c8_33 = arith.constant 8 : index
    %c0_34 = arith.constant 0 : index
    %35 = vector.load %arg6[%c8_33, %c0_34] : memref<40x288xf32, #tpu.memory_space<vmem>>, vector<24x144xf32>
    %36 = arith.truncf %35 : vector<24x144xf32> to vector<24x144xbf16>
    %c1_35 = arith.constant 1 : index
    %c1_36 = arith.constant 1 : index
    %c0_37 = arith.constant 0 : index
    %c0_38 = arith.constant 0 : index
    %37 = vector.load %arg2[%c1_35, %c1_36, %c0_37, %c0_38] : memref<3x3x216x72xbf16, #tpu.memory_space<vmem>>, vector<1x1x144x72xbf16>
    %38 = vector.shape_cast %37 : vector<1x1x144x72xbf16> to vector<144x72xbf16>
    %cst_39 = arith.constant dense<0.000000e+00> : vector<24x72xf32>
    %39 = tpu.matmul %36, %38, %cst_39 {dimension_numbers = #tpu.dot_dimension_numbers<[1], [0], [0], [1], [0, 0, 1, 1], [], []>} : vector<24x144xbf16>, vector<144x72xbf16>, vector<24x72xf32> -> vector<24x72xf32>
    %40 = arith.addf %34, %39 : vector<24x72xf32>
    %c9_40 = arith.constant 9 : index
    %c0_41 = arith.constant 0 : index
    %41 = vector.load %arg6[%c9_40, %c0_41] : memref<40x288xf32, #tpu.memory_space<vmem>>, vector<24x144xf32>
    %42 = arith.truncf %41 : vector<24x144xf32> to vector<24x144xbf16>
    %c1_42 = arith.constant 1 : index
    %c2_43 = arith.constant 2 : index
    %c0_44 = arith.constant 0 : index
    %c0_45 = arith.constant 0 : index
    %43 = vector.load %arg2[%c1_42, %c2_43, %c0_44, %c0_45] : memref<3x3x216x72xbf16, #tpu.memory_space<vmem>>, vector<1x1x144x72xbf16>
    %44 = vector.shape_cast %43 : vector<1x1x144x72xbf16> to vector<144x72xbf16>
    %cst_46 = arith.constant dense<0.000000e+00> : vector<24x72xf32>
    %45 = tpu.matmul %42, %44, %cst_46 {dimension_numbers = #tpu.dot_dimension_numbers<[1], [0], [0], [1], [0, 0, 1, 1], [], []>} : vector<24x144xbf16>, vector<144x72xbf16>, vector<24x72xf32> -> vector<24x72xf32>
    %46 = arith.addf %40, %45 : vector<24x72xf32>
    %c1_47 = arith.constant 1 : index
    %c0_48 = arith.constant 0 : index
    %c0_49 = arith.constant 0 : index
    %47 = vector.load %arg3[%c1_47, %c0_48, %c0_49] : memref<3x1x72xf32, #tpu.memory_space<vmem>>, vector<1x1x72xf32>
    %48 = vector.shape_cast %47 : vector<1x1x72xf32> to vector<1x72xf32>
    %49 = vector.broadcast %48 : vector<1x72xf32> to vector<24x72xf32>
    %50 = arith.addf %46, %49 : vector<24x72xf32>
    %cst_50 = arith.constant 0.000000e+00 : f32
    %51 = vector.broadcast %cst_50 : f32 to vector<24x72xf32>
    %52 = arith.maximumf %50, %51 : vector<24x72xf32>
    %53 = vector.broadcast %3 : vector<24x1xf32> to vector<24x72xf32>
    %54 = arith.mulf %53, %52 : vector<24x72xf32>
    %c8_51 = arith.constant 8 : index
    %c144 = arith.constant 144 : index
    %55 = vector.load %arg6[%c8_51, %c144] : memref<40x288xf32, #tpu.memory_space<vmem>>, vector<24x72xf32>
    tpu.vector_store %arg6[%c8_51, %c144], %54 {strides = array<i32>} : memref<40x288xf32, #tpu.memory_space<vmem>>, vector<24x72xf32>,
    %c7_52 = arith.constant 7 : index
    %c0_53 = arith.constant 0 : index
    %56 = vector.load %arg6[%c7_52, %c0_53] : memref<40x288xf32, #tpu.memory_space<vmem>>, vector<24x216xf32>
    %57 = arith.truncf %56 : vector<24x216xf32> to vector<24x216xbf16>
    %c2_54 = arith.constant 2 : index
    %c0_55 = arith.constant 0 : index
    %c0_56 = arith.constant 0 : index
    %c0_57 = arith.constant 0 : index
    %58 = vector.load %arg2[%c2_54, %c0_55, %c0_56, %c0_57] : memref<3x3x216x72xbf16, #tpu.memory_space<vmem>>, vector<1x1x216x72xbf16>
    %59 = vector.shape_cast %58 : vector<1x1x216x72xbf16> to vector<216x72xbf16>
    %cst_58 = arith.constant dense<0.000000e+00> : vector<24x72xf32>
    %60 = tpu.matmul %57, %59, %cst_58 {dimension_numbers = #tpu.dot_dimension_numbers<[1], [0], [0], [1], [0, 0, 1, 1], [], []>} : vector<24x216xbf16>, vector<216x72xbf16>, vector<24x72xf32> -> vector<24x72xf32>
    %c8_59 = arith.constant 8 : index
    %c0_60 = arith.constant 0 : index
    %61 = vector.load %arg6[%c8_59, %c0_60] : memref<40x288xf32, #tpu.memory_space<vmem>>, vector<24x216xf32>
    %62 = arith.truncf %61 : vector<24x216xf32> to vector<24x216xbf16>
    %c2_61 = arith.constant 2 : index
    %c1_62 = arith.constant 1 : index
    %c0_63 = arith.constant 0 : index
    %c0_64 = arith.constant 0 : index
    %63 = vector.load %arg2[%c2_61, %c1_62, %c0_63, %c0_64] : memref<3x3x216x72xbf16, #tpu.memory_space<vmem>>, vector<1x1x216x72xbf16>
    %64 = vector.shape_cast %63 : vector<1x1x216x72xbf16> to vector<216x72xbf16>
    %cst_65 = arith.constant dense<0.000000e+00> : vector<24x72xf32>
    %65 = tpu.matmul %62, %64, %cst_65 {dimension_numbers = #tpu.dot_dimension_numbers<[1], [0], [0], [1], [0, 0, 1, 1], [], []>} : vector<24x216xbf16>, vector<216x72xbf16>, vector<24x72xf32> -> vector<24x72xf32>
    %66 = arith.addf %60, %65 : vector<24x72xf32>
    %c9_66 = arith.constant 9 : index
    %c0_67 = arith.constant 0 : index
    %67 = vector.load %arg6[%c9_66, %c0_67] : memref<40x288xf32, #tpu.memory_space<vmem>>, vector<24x216xf32>
    %68 = arith.truncf %67 : vector<24x216xf32> to vector<24x216xbf16>
    %c2_68 = arith.constant 2 : index
    %c2_69 = arith.constant 2 : index
    %c0_70 = arith.constant 0 : index
    %c0_71 = arith.constant 0 : index
    %69 = vector.load %arg2[%c2_68, %c2_69, %c0_70, %c0_71] : memref<3x3x216x72xbf16, #tpu.memory_space<vmem>>, vector<1x1x216x72xbf16>
    %70 = vector.shape_cast %69 : vector<1x1x216x72xbf16> to vector<216x72xbf16>
    %cst_72 = arith.constant dense<0.000000e+00> : vector<24x72xf32>
    %71 = tpu.matmul %68, %70, %cst_72 {dimension_numbers = #tpu.dot_dimension_numbers<[1], [0], [0], [1], [0, 0, 1, 1], [], []>} : vector<24x216xbf16>, vector<216x72xbf16>, vector<24x72xf32> -> vector<24x72xf32>
    %72 = arith.addf %66, %71 : vector<24x72xf32>
    %c2_73 = arith.constant 2 : index
    %c0_74 = arith.constant 0 : index
    %c0_75 = arith.constant 0 : index
    %73 = vector.load %arg3[%c2_73, %c0_74, %c0_75] : memref<3x1x72xf32, #tpu.memory_space<vmem>>, vector<1x1x72xf32>
    %74 = vector.shape_cast %73 : vector<1x1x72xf32> to vector<1x72xf32>
    %75 = vector.broadcast %74 : vector<1x72xf32> to vector<24x72xf32>
    %76 = arith.addf %72, %75 : vector<24x72xf32>
    %cst_76 = arith.constant 0.000000e+00 : f32
    %77 = vector.broadcast %cst_76 : f32 to vector<24x72xf32>
    %78 = arith.maximumf %76, %77 : vector<24x72xf32>
    %79 = vector.broadcast %3 : vector<24x1xf32> to vector<24x72xf32>
    %80 = arith.mulf %79, %78 : vector<24x72xf32>
    %c8_77 = arith.constant 8 : index
    %c216 = arith.constant 216 : index
    %81 = vector.load %arg6[%c8_77, %c216] : memref<40x288xf32, #tpu.memory_space<vmem>>, vector<24x72xf32>
    tpu.vector_store %arg6[%c8_77, %c216], %80 {strides = array<i32>} : memref<40x288xf32, #tpu.memory_space<vmem>>, vector<24x72xf32>,
    %c8_78 = arith.constant 8 : index
    %c0_79 = arith.constant 0 : index
    %82 = vector.load %arg6[%c8_78, %c0_79] : memref<40x288xf32, #tpu.memory_space<vmem>>, vector<24x288xf32>
    %c0_80 = arith.constant 0 : index
    %c0_81 = arith.constant 0 : index
    %c0_82 = arith.constant 0 : index
    %83 = vector.load %arg5[%c0_80, %c0_81, %c0_82] : memref<1x24x288xf32, #tpu.memory_space<vmem>>, vector<1x24x288xf32>
    %84 = vector.shape_cast %83 : vector<1x24x288xf32> to vector<24x288xf32>
    %85 = vector.shape_cast %82 : vector<24x288xf32> to vector<1x24x288xf32>
    tpu.vector_store %arg5[%c0_80, %c0_81, %c0_82], %85 {strides = array<i32>} : memref<1x24x288xf32, #tpu.memory_space<vmem>>, vector<1x24x288xf32>,
    return
  }
  func.func @transform_0(%arg0: i32) -> (i32, i32, i32) {
    %c0_i32 = arith.constant 0 : i32
    %c0_i32_0 = arith.constant 0 : i32
    %c0_i32_1 = arith.constant 0 : i32
    return %arg0, %c0_i32, %c0_i32_0 : i32, i32, i32
  }
  func.func @transform_1(%arg0: i32) -> (i32, i32, i32, i32) {
    %c0_i32 = arith.constant 0 : i32
    %c0_i32_0 = arith.constant 0 : i32
    %c0_i32_1 = arith.constant 0 : i32
    %c0_i32_2 = arith.constant 0 : i32
    %c0_i32_3 = arith.constant 0 : i32
    return %c0_i32, %c0_i32_0, %c0_i32_1, %c0_i32_2 : i32, i32, i32, i32
  }
  func.func @transform_2(%arg0: i32) -> (i32, i32, i32) {
    %c0_i32 = arith.constant 0 : i32
    %c0_i32_0 = arith.constant 0 : i32
    %c0_i32_1 = arith.constant 0 : i32
    %c0_i32_2 = arith.constant 0 : i32
    return %c0_i32, %c0_i32_0, %c0_i32_1 : i32, i32, i32
  }
  func.func @transform_3(%arg0: i32) -> (i32, i32) {
    %c0_i32 = arith.constant 0 : i32
    %c0_i32_0 = arith.constant 0 : i32
    %c0_i32_1 = arith.constant 0 : i32
    return %c0_i32, %c0_i32_0 : i32, i32
  }
  func.func @transform_4(%arg0: i32) -> (i32, i32, i32) {
    %c0_i32 = arith.constant 0 : i32
    %c0_i32_0 = arith.constant 0 : i32
    %c0_i32_1 = arith.constant 0 : i32
    return %arg0, %c0_i32, %c0_i32_0 : i32, i32, i32
  }
}

</mosaic_0001>

<llo_original>
// kernel: tpu_custom_call.1
$region0: #{tpu_custom_call.1}
  #allocation0 [shape = 'u32[]', space=smem, size = 0x4, offset = 0x4, fixed_abs, tag = 'smem constant byte address 0x4 - core index']
  #allocation1 [shape = 'u32[144,128]{1,0:T(1,128)}', space=vmem, size = 0x12000, scoped, tag = 'internal scratch']
  #allocation2 [shape = 'f32[40,288]{1,0:T(8,128)}', space=vmem, size = 0xf000, scoped, tag = 'scratch operand']
  %s0 = inlined_call_operand.vmem [shape: f32[2,40,288], index: 0, kind: input, shape index: {}]
  %s1 = inlined_call_operand.vmem [shape: bf16[3,3,216,72], index: 1, kind: input, shape index: {}]
  %s2 = inlined_call_operand.vmem [shape: f32[3,1,72], index: 2, kind: input, shape index: {}]
  %s3 = inlined_call_operand.vmem [shape: f32[24,1], index: 3, kind: input, shape index: {}]
  %s4 = inlined_call_operand.hbm [shape: f32[2,24,288], index: 4, kind: output, shape index: {}]
  %s5 = sld [smem:[#allocation0]]
  $region49: #{tpu_custom_call.1} parent=0
    _
  %s7 = ssub.s32 1, %s5
  %s8 = scalar_select 0, %s7, %s5
  $region1: #{tpu_custom_call.1} parent=0
    #allocation3 [shape = 'u8[73728]{0}', space=vmem, size = 0x12000, scoped, tag = 'output window, operand 0']
    #allocation4 [shape = 's32[2]{0}', space=sflag, size = 0x8, scoped, tag = 'scoped memory for tpu_custom_call.1']
    %9 = vsyncpa [#allocation4], 0
    %s10 = scalar_lea.sflag [#allocation4], 1
    %11 = vsyncpa %s10, 0
    loop: start=0, step=1, limit=4
    $region2: #{tpu_custom_call.1} parent=1 // loop_pre_header
      _
    $region3: #{tpu_custom_call.1} parent=1 // loop_header
      %s13 = sphi 0, %s17
      %p14 = scmp.ge.s32.totalorder %s13, 4
      %s23 = sphi 0, %s25
      %s26 = sphi 0, %s23
      %s27 = sphi 0, %s26
      %s43 = sphi 0, %s27
      %s47 = sphi 0, %s47
      %s49 = sphi 0, %s47
      %s50 = sphi 0, %s49
      %s64 = sphi 0, %s50
      %s68 = sphi 0, %s68
      %s70 = sphi 0, %s68
      %s71 = sphi 0, %s70
      %s85 = sphi 0, %s71
      %s89 = sphi 0, %s89
      %s91 = sphi 0, %s89
      %s92 = sphi 0, %s91
      %s106 = sphi 0, %s92
      %s112 = sphi 0, %s114
      %s115 = sphi 0, %s112
      %s116 = sphi 0, %s115
      %s132 = sphi 0, %s116
    $region4: #{tpu_custom_call.1} parent=1 // loop_header_branch
      %16 = sbr.rel (%p14) target = $region8
    $region5: #{tpu_custom_call.1} parent=1 // loop_body
      %s18 = ssub.s32 %s13, 1
      %s19 = ssub.s32 %s13, 2
      %s20 = sadd.s32 %s13, 1
      %s21 = ssub.s32 %s13, %s20
      %p22 = scmp.eq.s32.totalorder %s21, 0
      %s24 = sadd.s32 %s23, 1
      %s25 = scalar_select %p22, %s23, %s24
      %p28 = pneg %p22
      %p29 = scmp.eq.s32.totalorder %s13, 1
      %p30 = por %p28, %p29
      %p31 = scmp.ne.s32.totalorder %s23, %s26
      %p32 = scmp.eq.s32.totalorder %s13, 0
      %p33 = por %p31, %p32
      %p34 = scmp.ne.s32.totalorder %s23, %s26
      %p35 = scmp.eq.s32.totalorder %s18, 1
      %p36 = por %p34, %p35
      %p37 = scmp.ne.s32.totalorder %s26, %s27
      %p38 = scmp.eq.s32.totalorder %s18, 0
      %p39 = por %p37, %p38
      %p40 = scmp.ne.s32.totalorder %s26, %s27
      %p41 = scmp.eq.s32.totalorder %s19, 1
      %p42 = por %p40, %p41
      %p44 = scmp.ne.s32.totalorder %s27, %s43
      %p45 = scmp.eq.s32.totalorder %s19, 0
      %p46 = por %p44, %p45
      %s48 = sadd.s32 %s47, 1
      %p51 = scmp.eq.s32.totalorder %s13, 1
      %p52 = scmp.ne.s32.totalorder %s47, %s49
      %p53 = scmp.eq.s32.totalorder %s13, 0
      %p54 = por %p52, %p53
      %p55 = scmp.ne.s32.totalorder %s47, %s49
      %p56 = scmp.eq.s32.totalorder %s18, 1
      %p57 = por %p55, %p56
      %p58 = scmp.ne.s32.totalorder %s49, %s50
      %p59 = scmp.eq.s32.totalorder %s18, 0
      %p60 = por %p58, %p59
      %p61 = scmp.ne.s32.totalorder %s49, %s50
      %p62 = scmp.eq.s32.totalorder %s19, 1
      %p63 = por %p61, %p62
      %p65 = scmp.ne.s32.totalorder %s50, %s64
      %p66 = scmp.eq.s32.totalorder %s19, 0
      %p67 = por %p65, %p66
      %s69 = sadd.s32 %s68, 1
      %p72 = scmp.eq.s32.totalorder %s13, 1
      %p73 = scmp.ne.s32.totalorder %s68, %s70
      %p74 = scmp.eq.s32.totalorder %s13, 0
      %p75 = por %p73, %p74
      %p76 = scmp.ne.s32.totalorder %s68, %s70
      %p77 = scmp.eq.s32.totalorder %s18, 1
      %p78 = por %p76, %p77
      %p79 = scmp.ne.s32.totalorder %s70, %s71
      %p80 = scmp.eq.s32.totalorder %s18, 0
      %p81 = por %p79, %p80
      %p82 = scmp.ne.s32.totalorder %s70, %s71
      %p83 = scmp.eq.s32.totalorder %s19, 1
      %p84 = por %p82, %p83
      %p86 = scmp.ne.s32.totalorder %s71, %s85
      %p87 = scmp.eq.s32.totalorder %s19, 0
      %p88 = por %p86, %p87
      %s90 = sadd.s32 %s89, 1
      %p93 = scmp.eq.s32.totalorder %s13, 1
      %p94 = scmp.ne.s32.totalorder %s89, %s91
      %p95 = scmp.eq.s32.totalorder %s13, 0
      %p96 = por %p94, %p95
      %p97 = scmp.ne.s32.totalorder %s89, %s91
      %p98 = scmp.eq.s32.totalorder %s18, 1
      %p99 = por %p97, %p98
      %p100 = scmp.ne.s32.totalorder %s91, %s92
      %p101 = scmp.eq.s32.totalorder %s18, 0
      %p102 = por %p100, %p101
      %p103 = scmp.ne.s32.totalorder %s91, %s92
      %p104 = scmp.eq.s32.totalorder %s19, 1
      %p105 = por %p103, %p104
      %p107 = scmp.ne.s32.totalorder %s92, %s106
      %p108 = scmp.eq.s32.totalorder %s19, 0
      %p109 = por %p107, %p108
      %s110 = ssub.s32 %s13, %s20
      %p111 = scmp.eq.s32.totalorder %s110, 0
      %s113 = sadd.s32 %s112, 1
      %s114 = scalar_select %p111, %s112, %s113
      %p117 = pneg %p111
      %p118 = scmp.eq.s32.totalorder %s13, 1
      %p119 = por %p117, %p118
      %p120 = scmp.ne.s32.totalorder %s112, %s115
      %p121 = scmp.eq.s32.totalorder %s13, 0
      %p122 = por %p120, %p121
      %p123 = scmp.ne.s32.totalorder %s112, %s115
      %p124 = scmp.eq.s32.totalorder %s18, 1
      %p125 = por %p123, %p124
      %p126 = scmp.ne.s32.totalorder %s115, %s116
      %p127 = scmp.eq.s32.totalorder %s18, 0
      %p128 = por %p126, %p127
      %p129 = scmp.ne.s32.totalorder %s115, %s116
      %p130 = scmp.eq.s32.totalorder %s19, 1
      %p131 = por %p129, %p130
      %p133 = scmp.ne.s32.totalorder %s116, %s132
      %p134 = scmp.eq.s32.totalorder %s19, 0
      %p135 = por %p133, %p134
      %p136 = scmp.le.s32.totalorder 1, %s13
      %p137 = scmp.lt.s32.totalorder %s13, 3
      %p138 = pnand %p136, %p137
      %p139 = pneg %p138
      // Predicated region
      $region9: #{tpu_custom_call.1} parent=5 // pred_check
        _
      $region10: #{tpu_custom_call.1} parent=5 // pred_check_branch
        %141 = sbr.rel (%p138) target = $region12
      $region11: #{tpu_custom_call.1} parent=5 // pred_region
        %s142 = ssub.s32 %s13, 1
        // Predicated region
        $region13: #{tpu_custom_call.1} parent=11 // pred_check
          %p143 = pneg %p60
        $region14: #{tpu_custom_call.1} parent=11 // pred_check_branch
          %145 = sbr.rel (%p143) target = $region16
        $region15: #{tpu_custom_call.1} parent=11 // pred_region
          _
        $region16: #{tpu_custom_call.1} parent=11 // pred_fallthru
          _
        // Predicated region
        $region17: #{tpu_custom_call.1} parent=11 // pred_check
          %p146 = pneg %p81
        $region18: #{tpu_custom_call.1} parent=11 // pred_check_branch
          %148 = sbr.rel (%p146) target = $region20
        $region19: #{tpu_custom_call.1} parent=11 // pred_region
          _
        $region20: #{tpu_custom_call.1} parent=11 // pred_fallthru
          _
        // Predicated region
        $region21: #{tpu_custom_call.1} parent=11 // pred_check
          %p149 = pneg %p102
        $region22: #{tpu_custom_call.1} parent=11 // pred_check_branch
          %151 = sbr.rel (%p149) target = $region24
        $region23: #{tpu_custom_call.1} parent=11 // pred_region
          _
        $region24: #{tpu_custom_call.1} parent=11 // pred_fallthru
          _
      $region12: #{tpu_custom_call.1} parent=5 // pred_fallthru
        _
      %p152 = scmp.lt.s32.totalorder %s13, 2
      // Predicated region
      $region25: #{tpu_custom_call.1} parent=5 // pred_check
        %p153 = pneg %p152
      $region26: #{tpu_custom_call.1} parent=5 // pred_check_branch
        %155 = sbr.rel (%p153) target = $region28
      $region27: #{tpu_custom_call.1} parent=5 // pred_region
        // Predicated region
        $region29: #{tpu_custom_call.1} parent=27 // pred_check
          %p156 = pneg %p33
        $region30: #{tpu_custom_call.1} parent=27 // pred_check_branch
          %158 = sbr.rel (%p156) target = $region32
        $region31: #{tpu_custom_call.1} parent=27 // pred_region
          %p159 = scmp.lt.s32.totalorder %s13, 1
          %s160 = scalar_select %p159, %s13, 1
          %s161 = smul.addr %s160, 15
          %s162 = smul.addr %s161, 8
          %s163 = scalar_lea.vmem %s0, %s162
        $region32: #{tpu_custom_call.1} parent=27 // pred_fallthru
          _
      $region28: #{tpu_custom_call.1} parent=5 // pred_fallthru
        _
      %p164 = scmp.le.s32.totalorder 1, %s13
      %p165 = scmp.lt.s32.totalorder %s13, 3
      %p166 = pnand %p164, %p165
      %p167 = pneg %p166
      // Predicated region
      $region33: #{tpu_custom_call.1} parent=5 // pred_check
        _
      $region34: #{tpu_custom_call.1} parent=5 // pred_check_branch
        %169 = sbr.rel (%p166) target = $region36
      $region35: #{tpu_custom_call.1} parent=5 // pred_region
        %s170 = ssub.s32 %s13, 1
        %p171 = scmp.lt.s32.totalorder %s18, 1
        %s172 = scalar_select %p171, %s18, 1
        %s173 = smul.addr %s172, 15
        %s174 = smul.addr %s173, 8
        %s175 = scalar_lea.vmem %s0, %s174
        %p176 = pneg %p39
        %p177 = pneg %p36
        %p178 = pneg %p60
        %p179 = pneg %p57
        %p180 = pneg %p81
        %p181 = pneg %p78
        %p182 = pneg %p102
        %p183 = pneg %p99
        %p184 = pneg %p128
        %p185 = pneg %p125
        %s186 = sand.u32 %s115, 1
        %s187 = scalar_lea.sflag [#allocation4], %s186
        %s188 = sand.u32 %s115, 1
        %s189 = smul.addr %s188, 72
        %s190 = scalar_lea.vmem [#allocation3], %s189
        %p191 = scmp.lt.s32.totalorder %s18, 1
        %s192 = scalar_select %p191, %s18, 1
        %s193 = smul.addr %s192, 15
        %s194 = smul.addr %s193, 8
        %s195 = scalar_lea.vmem %s0, %s194
        %v197 = vld [vmem:[%s195] sm:$0xff]
        %v198 = vld [vmem:[%s195 + $0x8] sm:$0xff]
        %v199 = vld [vmem:[%s195 + $0x10] sm:$0xff]
        %v200 = vld [vmem:[%s195 + $0x18] sm:$0xff]
        %v201 = vld [vmem:[%s195 + $0x20] sm:$0xff]
        %v202 = vld [vmem:[%s195 + $0x28] sm:$0xff]
        %v203 = vld [vmem:[%s195 + $0x30] sm:$0xff]
        %v204 = vld [vmem:[%s195 + $0x38] sm:$0xff]
        %v205 = vld [vmem:[%s195 + $0x40] sm:$0xff]
        %v206 = vld [vmem:[%s195 + $0x48] sm:$0xff]
        %v207 = vld [vmem:[%s195 + $0x50] sm:$0xff]
        %v208 = vld [vmem:[%s195 + $0x58] sm:$0xff]
        %v209 = vld [vmem:[%s195 + $0x60] sm:$0xff]
        %v210 = vld [vmem:[%s195 + $0x68] sm:$0xff]
        %v211 = vld [vmem:[%s195 + $0x70] sm:$0xff]
        %212 = vst [vmem:[#allocation2] sm:$0xff] %v197
        %213 = vst [vmem:[#allocation2 + $0x8] sm:$0xff] %v198
        %vm214 = vcmask 261120
        %215 = vst.msk [vmem:[#allocation2 + $0x10] sm:$0xff] %vm214, %v199
        %216 = vst [vmem:[#allocation2 + $0x18] sm:$0xff] %v200
        %217 = vst [vmem:[#allocation2 + $0x20] sm:$0xff] %v201
        %218 = vst.msk [vmem:[#allocation2 + $0x28] sm:$0xff] %vm214, %v202
        %219 = vst [vmem:[#allocation2 + $0x30] sm:$0xff] %v203
        %220 = vst [vmem:[#allocation2 + $0x38] sm:$0xff] %v204
        %221 = vst.msk [vmem:[#allocation2 + $0x40] sm:$0xff] %vm214, %v205
        %222 = vst [vmem:[#allocation2 + $0x48] sm:$0xff] %v206
        %223 = vst [vmem:[#allocation2 + $0x50] sm:$0xff] %v207
        %224 = vst.msk [vmem:[#allocation2 + $0x58] sm:$0xff] %vm214, %v208
        %225 = vst [vmem:[#allocation2 + $0x60] sm:$0xff] %v209
        %226 = vst [vmem:[#allocation2 + $0x68] sm:$0xff] %v210
        %227 = vst.msk [vmem:[#allocation2 + $0x70] sm:$0xff] %vm214, %v211
        %v228 = vld [vmem:[%s3] sm:$0xff]
        %v229 = vld [vmem:[%s3 + $0x8] sm:$0xff]
        %v230 = vld [vmem:[%s3 + $0x10] sm:$0xff]
        %v231 = vld [vmem:[#allocation2] sm:$0x80]
        %v232 = vld [vmem:[#allocation2 + $0x18] sm:$0xff]
        %v233 = vld [vmem:[#allocation2 + $0x30] sm:$0xff]
        %v234 = vld [vmem:[#allocation2 + $0x48] sm:$0x7f]
        %v235 = vpack.c.bf16 %v232, %v231
        %v236 = vpack.c.bf16 %v234, %v233
        %v237 = vld [vmem:[%s1] sm:$0xf]
        %v238 = vld [vmem:[%s1 + $0x4] sm:$0xf]
        %v239 = vld [vmem:[%s1 + $0x8] sm:$0xf]
        %v240 = vld [vmem:[%s1 + $0xc] sm:$0xf]
        %v241 = vld [vmem:[%s1 + $0x10] sm:$0xf]
        %v242 = vld [vmem:[%s1 + $0x14] sm:$0xf]
        %v243 = vld [vmem:[%s1 + $0x18] sm:$0xf]
        %v244 = vld [vmem:[%s1 + $0x1c] sm:$0xf]
        %v245 = vld [vmem:[%s1 + $0x20] sm:$0xf]
        %v246 = vld [vmem:[#allocation2 + $0x48] sm:$0xff]
        %v247 = vpack.c.bf16 %v233, %v232
        %v248 = vpack.c.bf16 %v246, %v246
        %s249 = scalar_lea.vmem %s1, 108
        %v250 = vld [vmem:[%s249] sm:$0xf]
        %v251 = vld [vmem:[%s249 + $0x4] sm:$0xf]
        %v252 = vld [vmem:[%s249 + $0x8] sm:$0xf]
        %v253 = vld [vmem:[%s249 + $0xc] sm:$0xf]
        %v254 = vld [vmem:[%s249 + $0x10] sm:$0xf]
        %v255 = vld [vmem:[%s249 + $0x14] sm:$0xf]
        %v256 = vld [vmem:[%s249 + $0x18] sm:$0xf]
        %v257 = vld [vmem:[%s249 + $0x1c] sm:$0xf]
        %v258 = vld [vmem:[%s249 + $0x20] sm:$0xf]
        %v268 = vunpack.c.l.b16 %v250
        %v269 = vunpack.c.l.b16 %v251
        %v270 = vunpack.c.l.b16 %v252
        %v271 = vunpack.c.l.b16 %v253
        %v272 = vunpack.c.l.b16 %v254
        %v273 = vunpack.c.l.b16 %v255
        %v274 = vunpack.c.l.b16 %v256
        %v275 = vunpack.c.l.b16 %v257
        %v276 = vunpack.c.l.b16 %v258
        %v277 = vpack.c.b16 %v269, %v268
        %v278 = vpack.c.b16 %v271, %v270
        %v279 = vpack.c.b16 %v273, %v272
        %v280 = vpack.c.b16 %v275, %v274
        %v281 = vpack.c.b16 %v276, %v276
        %vm286 = vcmask 588800
        %v288 = vsel %vm286, %v247, 0
        %v291 = vsel %vm286, %v248, 0
        %vm293 = vcmask 1043456
        %v295 = vsel %vm293, %v281, 0
        %297 = vmatprep.subr.bf16.mxu0 0
        %298 = vmatpush1.bf16.msra.mxu0 0
        %299 = vmatprep.subr.bf16.mxu0 0
        %300 = vmatpush1.bf16.msra.mxu0 0
        %301 = vmatprep.subr.bf16.mxu0 0
        %302 = vmatpush1.bf16.msra.mxu0 0
        %303 = vmatprep.subr.bf16.mxu0 0
        %304 = vmatpush1.bf16.msra.mxu0 %v295
        %305 = vmatprep.subr.bf16.mxu0 0
        %306 = vmatpush1.bf16.msra.mxu0 %v280
        %307 = vmatprep.subr.bf16.mxu0 0
        %308 = vmatpush1.bf16.msra.mxu0 %v279
        %309 = vmatprep.subr.bf16.mxu0 0
        %310 = vmatpush1.bf16.msra.mxu0 %v278
        %311 = vmatprep.subr.bf16.mxu0 0
        %312 = vmatpush1.bf16.msra.mxu0 %v277
        %313 = vmatprep.subr.bf16.mxu0 0
        %314 = vmatpush2.bf16.msra.mxu0 0
        %315 = vmatprep.subr.bf16.mxu0 0
        %316 = vmatpush2.bf16.msra.mxu0 0
        %317 = vmatprep.subr.bf16.mxu0 0
        %318 = vmatpush2.bf16.msra.mxu0 0
        %319 = vmatprep.subr.bf16.mxu0 0
        %320 = vmatpush2.bf16.msra.mxu0 0
        %321 = vmatprep.subr.bf16.mxu0 0
        %322 = vmatpush2.bf16.msra.mxu0 0
        %323 = vmatprep.subr.bf16.mxu0 0
        %324 = vmatpush2.bf16.msra.mxu0 0
        %325 = vmatprep.subr.bf16.mxu0 0
        %326 = vmatpush2.bf16.msra.mxu0 0
        %327 = vmatprep.subr.bf16.mxu0 0
        %328 = vmatpush2.bf16.msra.mxu0 0
        %329 = vmatprep.mubr.bf16.mxu0 0
        %330 = vmatmul.mubr.bf16.gmra.mxu0 %v288
        %v331 = vpop.f32.mrf.mxu0
        %v332 = vadd.f32 0.0, %v331
        %v333 = vpop.f32.mrf.mxu0
        %v334 = vpop.f32.mrf.mxu0
        %v335 = vadd.f32 0.0, %v334
        %v336 = vpop.f32.mrf.mxu0
        %337 = vmatprep.mubr.bf16.mxu0 0
        %338 = vmatmul.mubr.bf16.gmra.mxu0 %v291
        %v339 = vpop.f32.mrf.mxu0
        %v340 = vadd.f32 0.0, %v339
        %v341 = vpop.f32.mrf.mxu0
        %v342 = vpop.f32.mrf.mxu0
        %v343 = vpop.f32.mrf.mxu0
        %344 = vdwg.mxu0
        %vm345 = vsmask.f32 4352
        %v347 = vshrl.u32 %v235, 16
        %v349 = vrot.slane %v347, 3
        %v350 = vshll.u32 %v235, 16
        %v352 = vrot.slane %v350, 4
        %v353 = vor.u32 %v349, %v352
        %v355 = vshrl.u32 %v236, 16
        %v357 = vrot.slane %v355, 3
        %v358 = vshll.u32 %v236, 16
        %v360 = vrot.slane %v358, 4
        %v361 = vor.u32 %v357, %v360
        %v362 = vsel %vm345, %v353, %v361
        %v372 = vunpack.c.l.b16 %v237
        %v373 = vunpack.c.l.b16 %v238
        %v374 = vunpack.c.l.b16 %v239
        %v375 = vunpack.c.l.b16 %v240
        %v376 = vunpack.c.l.b16 %v241
        %v377 = vunpack.c.l.b16 %v242
        %v378 = vunpack.c.l.b16 %v243
        %v379 = vunpack.c.l.b16 %v244
        %v380 = vunpack.c.l.b16 %v245
        %v381 = vpack.c.b16 %v373, %v372
        %v382 = vpack.c.b16 %v375, %v374
        %v383 = vpack.c.b16 %v377, %v376
        %v384 = vpack.c.b16 %v379, %v378
        %v385 = vpack.c.b16 %v380, %v380
        %v391 = vsel %vm286, %v362, 0
        %v394 = vsel %vm286, %v361, 0
        %v397 = vsel %vm293, %v385, 0
        %399 = vmatprep.subr.bf16.mxu0 0
        %400 = vmatpush1.bf16.msra.mxu0 0
        %401 = vmatprep.subr.bf16.mxu0 0
        %402 = vmatpush1.bf16.msra.mxu0 0
        %403 = vmatprep.subr.bf16.mxu0 0
        %404 = vmatpush1.bf16.msra.mxu0 0
        %405 = vmatprep.subr.bf16.mxu0 0
        %406 = vmatpush1.bf16.msra.mxu0 %v397
        %407 = vmatprep.subr.bf16.mxu0 0
        %408 = vmatpush1.bf16.msra.mxu0 %v384
        %409 = vmatprep.subr.bf16.mxu0 0
        %410 = vmatpush1.bf16.msra.mxu0 %v383
        %411 = vmatprep.subr.bf16.mxu0 0
        %412 = vmatpush1.bf16.msra.mxu0 %v382
        %413 = vmatprep.subr.bf16.mxu0 0
        %414 = vmatpush1.bf16.msra.mxu0 %v381
        %415 = vmatprep.subr.bf16.mxu0 0
        %416 = vmatpush2.bf16.msra.mxu0 0
        %417 = vmatprep.subr.bf16.mxu0 0
        %418 = vmatpush2.bf16.msra.mxu0 0
        %419 = vmatprep.subr.bf16.mxu0 0
        %420 = vmatpush2.bf16.msra.mxu0 0
        %421 = vmatprep.subr.bf16.mxu0 0
        %422 = vmatpush2.bf16.msra.mxu0 0
        %423 = vmatprep.subr.bf16.mxu0 0
        %424 = vmatpush2.bf16.msra.mxu0 0
        %425 = vmatprep.subr.bf16.mxu0 0
        %426 = vmatpush2.bf16.msra.mxu0 0
        %427 = vmatprep.subr.bf16.mxu0 0
        %428 = vmatpush2.bf16.msra.mxu0 0
        %429 = vmatprep.subr.bf16.mxu0 0
        %430 = vmatpush2.bf16.msra.mxu0 0
        %431 = vmatprep.mubr.bf16.mxu0 0
        %432 = vmatmul.mubr.bf16.gmra.mxu0 %v391
        %v433 = vpop.f32.mrf.mxu0
        %v434 = vadd.f32 %v332, %v433
        %v435 = vpop.f32.mrf.mxu0
        %v436 = vpop.f32.mrf.mxu0
        %v437 = vadd.f32 %v335, %v436
        %v438 = vpop.f32.mrf.mxu0
        %439 = vmatprep.mubr.bf16.mxu0 0
        %440 = vmatmul.mubr.bf16.gmra.mxu0 %v394
        %v441 = vpop.f32.mrf.mxu0
        %v442 = vadd.f32 %v340, %v441
        %v443 = vpop.f32.mrf.mxu0
        %v444 = vpop.f32.mrf.mxu0
        %v445 = vpop.f32.mrf.mxu0
        %446 = vdwg.mxu0
        %v447 = vld [vmem:[#allocation2 + $0x18] sm:$0xfe]
        %v448 = vld [vmem:[#allocation2 + $0x30] sm:$0xff]
        %v449 = vld [vmem:[#allocation2 + $0x48] sm:$0xff]
        %v450 = vld [vmem:[#allocation2 + $0x60] sm:$0x1]
        %v451 = vpack.c.bf16 %v448, %v447
        %v452 = vpack.c.bf16 %v450, %v449
        %s453 = scalar_lea.vmem %s1, 216
        %v454 = vld [vmem:[%s453] sm:$0xf]
        %v455 = vld [vmem:[%s453 + $0x4] sm:$0xf]
        %v456 = vld [vmem:[%s453 + $0x8] sm:$0xf]
        %v457 = vld [vmem:[%s453 + $0xc] sm:$0xf]
        %v458 = vld [vmem:[%s453 + $0x10] sm:$0xf]
        %v459 = vld [vmem:[%s453 + $0x14] sm:$0xf]
        %v460 = vld [vmem:[%s453 + $0x18] sm:$0xf]
        %v461 = vld [vmem:[%s453 + $0x1c] sm:$0xf]
        %v462 = vld [vmem:[%s453 + $0x20] sm:$0xf]
        %vm463 = vsmask.f32 7424
        %v465 = vshrl.u32 %v451, 16
        %v467 = vshll.u32 %v451, 16
        %v469 = vrot.slane %v467, 1
        %v470 = vor.u32 %v465, %v469
        %v472 = vshll.u32 %v452, 16
        %v474 = vrot.slane %v472, 1
        %v475 = vsel %vm463, %v470, %v474
        %v476 = vshrl.u32 %v452, 16
        %v478 = vor.u32 %v476, %v474
        %v488 = vunpack.c.l.b16 %v454
        %v489 = vunpack.c.l.b16 %v455
        %v490 = vunpack.c.l.b16 %v456
        %v491 = vunpack.c.l.b16 %v457
        %v492 = vunpack.c.l.b16 %v458
        %v493 = vunpack.c.l.b16 %v459
        %v494 = vunpack.c.l.b16 %v460
        %v495 = vunpack.c.l.b16 %v461
        %v496 = vunpack.c.l.b16 %v462
        %v497 = vpack.c.b16 %v489, %v488
        %v498 = vpack.c.b16 %v491, %v490
        %v499 = vpack.c.b16 %v493, %v492
        %v500 = vpack.c.b16 %v495, %v494
        %v501 = vpack.c.b16 %v496, %v496
        %v507 = vsel %vm286, %v475, 0
        %v510 = vsel %vm286, %v478, 0
        %v513 = vsel %vm293, %v501, 0
        %515 = vmatprep.subr.bf16.mxu0 0
        %516 = vmatpush1.bf16.msra.mxu0 0
        %517 = vmatprep.subr.bf16.mxu0 0
        %518 = vmatpush1.bf16.msra.mxu0 0
        %519 = vmatprep.subr.bf16.mxu0 0
        %520 = vmatpush1.bf16.msra.mxu0 0
        %521 = vmatprep.subr.bf16.mxu0 0
        %522 = vmatpush1.bf16.msra.mxu0 %v513
        %523 = vmatprep.subr.bf16.mxu0 0
        %524 = vmatpush1.bf16.msra.mxu0 %v500
        %525 = vmatprep.subr.bf16.mxu0 0
        %526 = vmatpush1.bf16.msra.mxu0 %v499
        %527 = vmatprep.subr.bf16.mxu0 0
        %528 = vmatpush1.bf16.msra.mxu0 %v498
        %529 = vmatprep.subr.bf16.mxu0 0
        %530 = vmatpush1.bf16.msra.mxu0 %v497
        %531 = vmatprep.subr.bf16.mxu0 0
        %532 = vmatpush2.bf16.msra.mxu0 0
        %533 = vmatprep.subr.bf16.mxu0 0
        %534 = vmatpush2.bf16.msra.mxu0 0
        %535 = vmatprep.subr.bf16.mxu0 0
        %536 = vmatpush2.bf16.msra.mxu0 0
        %537 = vmatprep.subr.bf16.mxu0 0
        %538 = vmatpush2.bf16.msra.mxu0 0
        %539 = vmatprep.subr.bf16.mxu0 0
        %540 = vmatpush2.bf16.msra.mxu0 0
        %541 = vmatprep.subr.bf16.mxu0 0
        %542 = vmatpush2.bf16.msra.mxu0 0
        %543 = vmatprep.subr.bf16.mxu0 0
        %544 = vmatpush2.bf16.msra.mxu0 0
        %545 = vmatprep.subr.bf16.mxu0 0
        %546 = vmatpush2.bf16.msra.mxu0 0
        %547 = vmatprep.mubr.bf16.mxu0 0
        %548 = vmatmul.mubr.bf16.gmra.mxu0 %v507
        %v549 = vpop.f32.mrf.mxu0
        %v550 = vadd.f32 0.0, %v549
        %v551 = vpop.f32.mrf.mxu0
        %v552 = vpop.f32.mrf.mxu0
        %v553 = vadd.f32 0.0, %v552
        %v554 = vpop.f32.mrf.mxu0
        %555 = vmatprep.mubr.bf16.mxu0 0
        %556 = vmatmul.mubr.bf16.gmra.mxu0 %v510
        %v557 = vpop.f32.mrf.mxu0
        %v558 = vadd.f32 0.0, %v557
        %v559 = vpop.f32.mrf.mxu0
        %v560 = vpop.f32.mrf.mxu0
        %v561 = vpop.f32.mrf.mxu0
        %562 = vdwg.mxu0
        %v563 = vadd.f32 %v434, %v550
        %v564 = vadd.f32 %v437, %v553
        %v565 = vadd.f32 %v442, %v558
        %v566 = vld [vmem:[%s2] sm:$0x1]
        %v568 = vlaneseq
        %v569 = vshrl.u32 %v568, 7
        %v570 = vsub.s32 0, %v569
        %v571 = vrot.slane %v566, %v570
        %v573 = vadd.f32 %v563, %v571
        %v574 = vadd.f32 %v564, %v571
        %v575 = vadd.f32 %v565, %v571
        %v576 = vmax.f32 %v573, 0.0
        %v577 = vmax.f32 %v574, 0.0
        %v578 = vmax.f32 %v575, 0.0
        %580 = vset.pattern.permute.xlu0 0
        %581 = vperm.xlu0 %580, %v228
        %v582 = vpop.permute.xlu0 %581
        %585 = vset.pattern.permute.xlu0 0
        %586 = vperm.xlu0 %585, %v229
        %v587 = vpop.permute.xlu0 %586
        %590 = vset.pattern.permute.xlu0 0
        %591 = vperm.xlu0 %590, %v230
        %v592 = vpop.permute.xlu0 %591
        %v594 = vmul.f32 %v582, %v576
        %v595 = vmul.f32 %v587, %v577
        %v596 = vmul.f32 %v592, %v578
        %600 = vrot.lane.b32.xlu0 %v594, 72
        %v601 = vpop.permute.xlu0 %600
        %602 = vrot.lane.b32.xlu0 %v595, 72
        %v603 = vpop.permute.xlu0 %602
        %604 = vrot.lane.b32.xlu0 %v596, 72
        %v605 = vpop.permute.xlu0 %604
        %vm609 = vcmask 1048128
        %610 = vst.msk [vmem:[#allocation2 + $0x18] sm:$0xff] %vm609, %v601
        %vm611 = vcmask 130048
        %612 = vst.msk [vmem:[#allocation2 + $0x20] sm:$0xff] %vm611, %v601
        %613 = vst.msk [vmem:[#allocation2 + $0x30] sm:$0xff] %vm609, %v603
        %614 = vst.msk [vmem:[#allocation2 + $0x38] sm:$0xff] %vm611, %v603
        %615 = vst.msk [vmem:[#allocation2 + $0x48] sm:$0xff] %vm609, %v605
        %616 = vst.msk [vmem:[#allocation2 + $0x50] sm:$0xff] %vm611, %v605
        %v617 = vld [vmem:[#allocation2] sm:$0x80]
        %v618 = vld [vmem:[#allocation2 + $0x8] sm:$0x80]
        %v619 = vld [vmem:[#allocation2 + $0x18] sm:$0xff]
        %v620 = vld [vmem:[#allocation2 + $0x20] sm:$0xff]
        %v621 = vld [vmem:[#allocation2 + $0x30] sm:$0xff]
        %v622 = vld [vmem:[#allocation2 + $0x38] sm:$0xff]
        %v623 = vld [vmem:[#allocation2 + $0x48] sm:$0x7f]
        %v624 = vld [vmem:[#allocation2 + $0x50] sm:$0x7f]
        %v625 = vpack.c.bf16 %v619, %v617
        %v626 = vpack.c.bf16 %v620, %v618
        %v627 = vpack.c.bf16 %v623, %v621
        %v628 = vpack.c.bf16 %v624, %v622
        %s629 = scalar_lea.vmem %s1, 324
        %v630 = vld [vmem:[%s629] sm:$0xf]
        %v631 = vld [vmem:[%s629 + $0x4] sm:$0xf]
        %v632 = vld [vmem:[%s629 + $0x8] sm:$0xf]
        %v633 = vld [vmem:[%s629 + $0xc] sm:$0xf]
        %v634 = vld [vmem:[%s629 + $0x10] sm:$0xf]
        %v635 = vld [vmem:[%s629 + $0x14] sm:$0xf]
        %v636 = vld [vmem:[%s629 + $0x18] sm:$0xf]
        %v637 = vld [vmem:[%s629 + $0x1c] sm:$0xf]
        %v638 = vld [vmem:[%s629 + $0x20] sm:$0xf]
        %v639 = vld [vmem:[%s629 + $0x24] sm:$0xf]
        %v640 = vld [vmem:[%s629 + $0x28] sm:$0xf]
        %v641 = vld [vmem:[%s629 + $0x2c] sm:$0xf]
        %v642 = vld [vmem:[%s629 + $0x30] sm:$0xf]
        %v643 = vld [vmem:[%s629 + $0x34] sm:$0xf]
        %v644 = vld [vmem:[%s629 + $0x38] sm:$0xf]
        %v645 = vld [vmem:[%s629 + $0x3c] sm:$0xf]
        %v646 = vld [vmem:[%s629 + $0x40] sm:$0xf]
        %v647 = vld [vmem:[%s629 + $0x44] sm:$0xf]
        %v648 = vld [vmem:[#allocation2 + $0x48] sm:$0xff]
        %v649 = vld [vmem:[#allocation2 + $0x50] sm:$0xff]
        %v650 = vpack.c.bf16 %v621, %v619
        %v651 = vpack.c.bf16 %v622, %v620
        %v652 = vpack.c.bf16 %v648, %v648
        %v653 = vpack.c.bf16 %v649, %v649
        %s654 = scalar_lea.vmem %s1, 432
        %v655 = vld [vmem:[%s654] sm:$0xf]
        %v656 = vld [vmem:[%s654 + $0x4] sm:$0xf]
        %v657 = vld [vmem:[%s654 + $0x8] sm:$0xf]
        %v658 = vld [vmem:[%s654 + $0xc] sm:$0xf]
        %v659 = vld [vmem:[%s654 + $0x10] sm:$0xf]
        %v660 = vld [vmem:[%s654 + $0x14] sm:$0xf]
        %v661 = vld [vmem:[%s654 + $0x18] sm:$0xf]
        %v662 = vld [vmem:[%s654 + $0x1c] sm:$0xf]
        %v663 = vld [vmem:[%s654 + $0x20] sm:$0xf]
        %v664 = vld [vmem:[%s654 + $0x24] sm:$0xf]
        %v665 = vld [vmem:[%s654 + $0x28] sm:$0xf]
        %v666 = vld [vmem:[%s654 + $0x2c] sm:$0xf]
        %v667 = vld [vmem:[%s654 + $0x30] sm:$0xf]
        %v668 = vld [vmem:[%s654 + $0x34] sm:$0xf]
        %v669 = vld [vmem:[%s654 + $0x38] sm:$0xf]
        %v670 = vld [vmem:[%s654 + $0x3c] sm:$0xf]
        %v671 = vld [vmem:[%s654 + $0x40] sm:$0xf]
        %v672 = vld [vmem:[%s654 + $0x44] sm:$0xf]
        %v691 = vunpack.c.l.b16 %v655
        %v692 = vunpack.c.l.b16 %v656
        %v693 = vunpack.c.l.b16 %v657
        %v694 = vunpack.c.l.b16 %v658
        %v695 = vunpack.c.l.b16 %v659
        %v696 = vunpack.c.l.b16 %v660
        %v697 = vunpack.c.l.b16 %v661
        %v698 = vunpack.c.l.b16 %v662
        %v699 = vunpack.c.l.b16 %v663
        %v700 = vunpack.c.l.b16 %v664
        %v701 = vunpack.c.l.b16 %v665
        %v702 = vunpack.c.l.b16 %v666
        %v703 = vunpack.c.l.b16 %v667
        %v704 = vunpack.c.l.b16 %v668
        %v705 = vunpack.c.l.b16 %v669
        %v706 = vunpack.c.l.b16 %v670
        %v707 = vunpack.c.l.b16 %v671
        %v708 = vunpack.c.l.b16 %v672
        %v709 = vpack.c.b16 %v692, %v691
        %v710 = vpack.c.b16 %v694, %v693
        %v711 = vpack.c.b16 %v696, %v695
        %v712 = vpack.c.b16 %v698, %v697
        %v713 = vpack.c.b16 %v700, %v699
        %v714 = vpack.c.b16 %v702, %v701
        %v715 = vpack.c.b16 %v704, %v703
        %v716 = vpack.c.b16 %v706, %v705
        %v717 = vpack.c.b16 %v708, %v707
        %v728 = vsel %vm611, %v651, 0
        %v731 = vsel %vm611, %v653, 0
        %733 = vmatprep.subr.bf16.mxu0 0
        %734 = vmatpush1.bf16.msra.mxu0 %v716
        %735 = vmatprep.subr.bf16.mxu0 0
        %736 = vmatpush1.bf16.msra.mxu0 %v715
        %737 = vmatprep.subr.bf16.mxu0 0
        %738 = vmatpush1.bf16.msra.mxu0 %v714
        %739 = vmatprep.subr.bf16.mxu0 0
        %740 = vmatpush1.bf16.msra.mxu0 %v713
        %741 = vmatprep.subr.bf16.mxu0 0
        %742 = vmatpush1.bf16.msra.mxu0 %v712
        %743 = vmatprep.subr.bf16.mxu0 0
        %744 = vmatpush1.bf16.msra.mxu0 %v711
        %745 = vmatprep.subr.bf16.mxu0 0
        %746 = vmatpush1.bf16.msra.mxu0 %v710
        %747 = vmatprep.subr.bf16.mxu0 0
        %748 = vmatpush1.bf16.msra.mxu0 %v709
        %749 = vmatprep.subr.bf16.mxu0 0
        %750 = vmatpush2.bf16.msra.mxu0 0
        %751 = vmatprep.subr.bf16.mxu0 0
        %752 = vmatpush2.bf16.msra.mxu0 0
        %753 = vmatprep.subr.bf16.mxu0 0
        %754 = vmatpush2.bf16.msra.mxu0 0
        %755 = vmatprep.subr.bf16.mxu0 0
        %756 = vmatpush2.bf16.msra.mxu0 0
        %757 = vmatprep.subr.bf16.mxu0 0
        %758 = vmatpush2.bf16.msra.mxu0 0
        %759 = vmatprep.subr.bf16.mxu0 0
        %760 = vmatpush2.bf16.msra.mxu0 0
        %761 = vmatprep.subr.bf16.mxu0 0
        %762 = vmatpush2.bf16.msra.mxu0 0
        %763 = vmatprep.subr.bf16.mxu0 0
        %764 = vmatpush2.bf16.msra.mxu0 %v717
        %765 = vmatprep.mubr.bf16.mxu0 %v728
        %766 = vmatmul.mubr.bf16.gmra.mxu0 %v650
        %v767 = vpop.f32.mrf.mxu0
        %v768 = vadd.f32 0.0, %v767
        %v769 = vpop.f32.mrf.mxu0
        %v770 = vpop.f32.mrf.mxu0
        %v771 = vadd.f32 0.0, %v770
        %v772 = vpop.f32.mrf.mxu0
        %773 = vmatprep.mubr.bf16.mxu0 %v731
        %774 = vmatmul.mubr.bf16.gmra.mxu0 %v652
        %v775 = vpop.f32.mrf.mxu0
        %v776 = vadd.f32 0.0, %v775
        %v777 = vpop.f32.mrf.mxu0
        %v778 = vpop.f32.mrf.mxu0
        %v779 = vpop.f32.mrf.mxu0
        %780 = vdwg.mxu0
        %v782 = vshrl.u32 %v625, 16
        %v784 = vrot.slane %v782, 3
        %v785 = vshll.u32 %v625, 16
        %v787 = vrot.slane %v785, 4
        %v788 = vor.u32 %v784, %v787
        %v790 = vshrl.u32 %v627, 16
        %v792 = vrot.slane %v790, 3
        %v793 = vshll.u32 %v627, 16
        %v795 = vrot.slane %v793, 4
        %v796 = vor.u32 %v792, %v795
        %v797 = vsel %vm345, %v788, %v796
        %v799 = vshrl.u32 %v626, 16
        %v801 = vrot.slane %v799, 3
        %v802 = vshll.u32 %v626, 16
        %v804 = vrot.slane %v802, 4
        %v805 = vor.u32 %v801, %v804
        %v807 = vshrl.u32 %v628, 16
        %v809 = vrot.slane %v807, 3
        %v810 = vshll.u32 %v628, 16
        %v812 = vrot.slane %v810, 4
        %v813 = vor.u32 %v809, %v812
        %v814 = vsel %vm345, %v805, %v813
        %v835 = vunpack.c.l.b16 %v630
        %v836 = vunpack.c.l.b16 %v631
        %v837 = vunpack.c.l.b16 %v632
        %v838 = vunpack.c.l.b16 %v633
        %v839 = vunpack.c.l.b16 %v634
        %v840 = vunpack.c.l.b16 %v635
        %v841 = vunpack.c.l.b16 %v636
        %v842 = vunpack.c.l.b16 %v637
        %v843 = vunpack.c.l.b16 %v638
        %v844 = vunpack.c.l.b16 %v639
        %v845 = vunpack.c.l.b16 %v640
        %v846 = vunpack.c.l.b16 %v641
        %v847 = vunpack.c.l.b16 %v642
        %v848 = vunpack.c.l.b16 %v643
        %v849 = vunpack.c.l.b16 %v644
        %v850 = vunpack.c.l.b16 %v645
        %v851 = vunpack.c.l.b16 %v646
        %v852 = vunpack.c.l.b16 %v647
        %v853 = vpack.c.b16 %v836, %v835
        %v854 = vpack.c.b16 %v838, %v837
        %v855 = vpack.c.b16 %v840, %v839
        %v856 = vpack.c.b16 %v842, %v841
        %v857 = vpack.c.b16 %v844, %v843
        %v858 = vpack.c.b16 %v846, %v845
        %v859 = vpack.c.b16 %v848, %v847
        %v860 = vpack.c.b16 %v850, %v849
        %v861 = vpack.c.b16 %v852, %v851
        %v872 = vsel %vm611, %v814, 0
        %v875 = vsel %vm611, %v813, 0
        %877 = vmatprep.subr.bf16.mxu0 0
        %878 = vmatpush1.bf16.msra.mxu0 %v860
        %879 = vmatprep.subr.bf16.mxu0 0
        %880 = vmatpush1.bf16.msra.mxu0 %v859
        %881 = vmatprep.subr.bf16.mxu0 0
        %882 = vmatpush1.bf16.msra.mxu0 %v858
        %883 = vmatprep.subr.bf16.mxu0 0
        %884 = vmatpush1.bf16.msra.mxu0 %v857
        %885 = vmatprep.subr.bf16.mxu0 0
        %886 = vmatpush1.bf16.msra.mxu0 %v856
        %887 = vmatprep.subr.bf16.mxu0 0
        %888 = vmatpush1.bf16.msra.mxu0 %v855
        %889 = vmatprep.subr.bf16.mxu0 0
        %890 = vmatpush1.bf16.msra.mxu0 %v854
        %891 = vmatprep.subr.bf16.mxu0 0
        %892 = vmatpush1.bf16.msra.mxu0 %v853
        %893 = vmatprep.subr.bf16.mxu0 0
        %894 = vmatpush2.bf16.msra.mxu0 0
        %895 = vmatprep.subr.bf16.mxu0 0
        %896 = vmatpush2.bf16.msra.mxu0 0
        %897 = vmatprep.subr.bf16.mxu0 0
        %898 = vmatpush2.bf16.msra.mxu0 0
        %899 = vmatprep.subr.bf16.mxu0 0
        %900 = vmatpush2.bf16.msra.mxu0 0
        %901 = vmatprep.subr.bf16.mxu0 0
        %902 = vmatpush2.bf16.msra.mxu0 0
        %903 = vmatprep.subr.bf16.mxu0 0
        %904 = vmatpush2.bf16.msra.mxu0 0
        %905 = vmatprep.subr.bf16.mxu0 0
        %906 = vmatpush2.bf16.msra.mxu0 0
        %907 = vmatprep.subr.bf16.mxu0 0
        %908 = vmatpush2.bf16.msra.mxu0 %v861
        %909 = vmatprep.mubr.bf16.mxu0 %v872
        %910 = vmatmul.mubr.bf16.gmra.mxu0 %v797
        %v911 = vpop.f32.mrf.mxu0
        %v912 = vadd.f32 %v768, %v911
        %v913 = vpop.f32.mrf.mxu0
        %v914 = vpop.f32.mrf.mxu0
        %v915 = vadd.f32 %v771, %v914
        %v916 = vpop.f32.mrf.mxu0
        %917 = vmatprep.mubr.bf16.mxu0 %v875
        %918 = vmatmul.mubr.bf16.gmra.mxu0 %v796
        %v919 = vpop.f32.mrf.mxu0
        %v920 = vadd.f32 %v776, %v919
        %v921 = vpop.f32.mrf.mxu0
        %v922 = vpop.f32.mrf.mxu0
        %v923 = vpop.f32.mrf.mxu0
        %924 = vdwg.mxu0
        %v925 = vld [vmem:[#allocation2 + $0x18] sm:$0xfe]
        %v926 = vld [vmem:[#allocation2 + $0x20] sm:$0xfe]
        %v927 = vld [vmem:[#allocation2 + $0x30] sm:$0xff]
        %v928 = vld [vmem:[#allocation2 + $0x38] sm:$0xff]
        %v929 = vld [vmem:[#allocation2 + $0x48] sm:$0xff]
        %v930 = vld [vmem:[#allocation2 + $0x50] sm:$0xff]
        %v931 = vld [vmem:[#allocation2 + $0x60] sm:$0x1]
        %v932 = vld [vmem:[#allocation2 + $0x68] sm:$0x1]
        %v933 = vpack.c.bf16 %v927, %v925
        %v934 = vpack.c.bf16 %v928, %v926
        %v935 = vpack.c.bf16 %v931, %v929
        %v936 = vpack.c.bf16 %v932, %v930
        %s937 = scalar_lea.vmem %s1, 540
        %v938 = vld [vmem:[%s937] sm:$0xf]
        %v939 = vld [vmem:[%s937 + $0x4] sm:$0xf]
        %v940 = vld [vmem:[%s937 + $0x8] sm:$0xf]
        %v941 = vld [vmem:[%s937 + $0xc] sm:$0xf]
        %v942 = vld [vmem:[%s937 + $0x10] sm:$0xf]
        %v943 = vld [vmem:[%s937 + $0x14] sm:$0xf]
        %v944 = vld [vmem:[%s937 + $0x18] sm:$0xf]
        %v945 = vld [vmem:[%s937 + $0x1c] sm:$0xf]
        %v946 = vld [vmem:[%s937 + $0x20] sm:$0xf]
        %v947 = vld [vmem:[%s937 + $0x24] sm:$0xf]
        %v948 = vld [vmem:[%s937 + $0x28] sm:$0xf]
        %v949 = vld [vmem:[%s937 + $0x2c] sm:$0xf]
        %v950 = vld [vmem:[%s937 + $0x30] sm:$0xf]
        %v951 = vld [vmem:[%s937 + $0x34] sm:$0xf]
        %v952 = vld [vmem:[%s937 + $0x38] sm:$0xf]
        %v953 = vld [vmem:[%s937 + $0x3c] sm:$0xf]
        %v954 = vld [vmem:[%s937 + $0x40] sm:$0xf]
        %v955 = vld [vmem:[%s937 + $0x44] sm:$0xf]
        %v957 = vshrl.u32 %v933, 16
        %v959 = vshll.u32 %v933, 16
        %v961 = vrot.slane %v959, 1
        %v962 = vor.u32 %v957, %v961
        %v964 = vshll.u32 %v935, 16
        %v966 = vrot.slane %v964, 1
        %v967 = vsel %vm463, %v962, %v966
        %v969 = vshrl.u32 %v934, 16
        %v971 = vshll.u32 %v934, 16
        %v973 = vrot.slane %v971, 1
        %v974 = vor.u32 %v969, %v973
        %v976 = vshll.u32 %v936, 16
        %v978 = vrot.slane %v976, 1
        %v979 = vsel %vm463, %v974, %v978
        %v980 = vshrl.u32 %v935, 16
        %v982 = vor.u32 %v980, %v966
        %v983 = vshrl.u32 %v936, 16
        %v985 = vor.u32 %v983, %v978
        %v1006 = vunpack.c.l.b16 %v938
        %v1007 = vunpack.c.l.b16 %v939
        %v1008 = vunpack.c.l.b16 %v940
        %v1009 = vunpack.c.l.b16 %v941
        %v1010 = vunpack.c.l.b16 %v942
        %v1011 = vunpack.c.l.b16 %v943
        %v1012 = vunpack.c.l.b16 %v944
        %v1013 = vunpack.c.l.b16 %v945
        %v1014 = vunpack.c.l.b16 %v946
        %v1015 = vunpack.c.l.b16 %v947
        %v1016 = vunpack.c.l.b16 %v948
        %v1017 = vunpack.c.l.b16 %v949
        %v1018 = vunpack.c.l.b16 %v950
        %v1019 = vunpack.c.l.b16 %v951
        %v1020 = vunpack.c.l.b16 %v952
        %v1021 = vunpack.c.l.b16 %v953
        %v1022 = vunpack.c.l.b16 %v954
        %v1023 = vunpack.c.l.b16 %v955
        %v1024 = vpack.c.b16 %v1007, %v1006
        %v1025 = vpack.c.b16 %v1009, %v1008
        %v1026 = vpack.c.b16 %v1011, %v1010
        %v1027 = vpack.c.b16 %v1013, %v1012
        %v1028 = vpack.c.b16 %v1015, %v1014
        %v1029 = vpack.c.b16 %v1017, %v1016
        %v1030 = vpack.c.b16 %v1019, %v1018
        %v1031 = vpack.c.b16 %v1021, %v1020
        %v1032 = vpack.c.b16 %v1023, %v1022
        %v1043 = vsel %vm611, %v979, 0
        %v1046 = vsel %vm611, %v985, 0
        %1048 = vmatprep.subr.bf16.mxu0 0
        %1049 = vmatpush1.bf16.msra.mxu0 %v1031
        %1050 = vmatprep.subr.bf16.mxu0 0
        %1051 = vmatpush1.bf16.msra.mxu0 %v1030
        %1052 = vmatprep.subr.bf16.mxu0 0
        %1053 = vmatpush1.bf16.msra.mxu0 %v1029
        %1054 = vmatprep.subr.bf16.mxu0 0
        %1055 = vmatpush1.bf16.msra.mxu0 %v1028
        %1056 = vmatprep.subr.bf16.mxu0 0
        %1057 = vmatpush1.bf16.msra.mxu0 %v1027
        %1058 = vmatprep.subr.bf16.mxu0 0
        %1059 = vmatpush1.bf16.msra.mxu0 %v1026
        %1060 = vmatprep.subr.bf16.mxu0 0
        %1061 = vmatpush1.bf16.msra.mxu0 %v1025
        %1062 = vmatprep.subr.bf16.mxu0 0
        %1063 = vmatpush1.bf16.msra.mxu0 %v1024
        %1064 = vmatprep.subr.bf16.mxu0 0
        %1065 = vmatpush2.bf16.msra.mxu0 0
        %1066 = vmatprep.subr.bf16.mxu0 0
        %1067 = vmatpush2.bf16.msra.mxu0 0
        %1068 = vmatprep.subr.bf16.mxu0 0
        %1069 = vmatpush2.bf16.msra.mxu0 0
        %1070 = vmatprep.subr.bf16.mxu0 0
        %1071 = vmatpush2.bf16.msra.mxu0 0
        %1072 = vmatprep.subr.bf16.mxu0 0
        %1073 = vmatpush2.bf16.msra.mxu0 0
        %1074 = vmatprep.subr.bf16.mxu0 0
        %1075 = vmatpush2.bf16.msra.mxu0 0
        %1076 = vmatprep.subr.bf16.mxu0 0
        %1077 = vmatpush2.bf16.msra.mxu0 0
        %1078 = vmatprep.subr.bf16.mxu0 0
        %1079 = vmatpush2.bf16.msra.mxu0 %v1032
        %1080 = vmatprep.mubr.bf16.mxu0 %v1043
        %1081 = vmatmul.mubr.bf16.gmra.mxu0 %v967
        %v1082 = vpop.f32.mrf.mxu0
        %v1083 = vadd.f32 0.0, %v1082
        %v1084 = vpop.f32.mrf.mxu0
        %v1085 = vpop.f32.mrf.mxu0
        %v1086 = vadd.f32 0.0, %v1085
        %v1087 = vpop.f32.mrf.mxu0
        %1088 = vmatprep.mubr.bf16.mxu0 %v1046
        %1089 = vmatmul.mubr.bf16.gmra.mxu0 %v982
        %v1090 = vpop.f32.mrf.mxu0
        %v1091 = vadd.f32 0.0, %v1090
        %v1092 = vpop.f32.mrf.mxu0
        %v1093 = vpop.f32.mrf.mxu0
        %v1094 = vpop.f32.mrf.mxu0
        %1095 = vdwg.mxu0
        %v1096 = vadd.f32 %v912, %v1083
        %v1097 = vadd.f32 %v915, %v1086
        %v1098 = vadd.f32 %v920, %v1091
        %s1099 = scalar_lea.vmem %s2, 1
        %v1100 = vld [vmem:[%s1099] sm:$0x1]
        %v1102 = vlaneseq
        %v1103 = vshrl.u32 %v1102, 7
        %v1104 = vsub.s32 0, %v1103
        %v1105 = vrot.slane %v1100, %v1104
        %v1107 = vadd.f32 %v1096, %v1105
        %v1108 = vadd.f32 %v1097, %v1105
        %v1109 = vadd.f32 %v1098, %v1105
        %v1110 = vmax.f32 %v1107, 0.0
        %v1111 = vmax.f32 %v1108, 0.0
        %v1112 = vmax.f32 %v1109, 0.0
        %v1113 = vmul.f32 %v582, %v1110
        %v1114 = vmul.f32 %v587, %v1111
        %v1115 = vmul.f32 %v592, %v1112
        %1119 = vrot.lane.b32.xlu0 %v1113, 16
        %v1120 = vpop.permute.xlu0 %1119
        %1121 = vrot.lane.b32.xlu0 %v1114, 16
        %v1122 = vpop.permute.xlu0 %1121
        %1123 = vrot.lane.b32.xlu0 %v1115, 16
        %v1124 = vpop.permute.xlu0 %1123
        %vm1128 = vcmask 720000
        %1129 = vst.msk [vmem:[#allocation2 + $0x20] sm:$0xff] %vm1128, %v1120
        %1130 = vst.msk [vmem:[#allocation2 + $0x38] sm:$0xff] %vm1128, %v1122
        %1131 = vst.msk [vmem:[#allocation2 + $0x50] sm:$0xff] %vm1128, %v1124
        %v1132 = vld [vmem:[#allocation2] sm:$0x80]
        %v1133 = vld [vmem:[#allocation2 + $0x8] sm:$0x80]
        %v1134 = vld [vmem:[#allocation2 + $0x18] sm:$0xff]
        %v1135 = vld [vmem:[#allocation2 + $0x20] sm:$0xff]
        %v1136 = vld [vmem:[#allocation2 + $0x30] sm:$0xff]
        %v1137 = vld [vmem:[#allocation2 + $0x38] sm:$0xff]
        %v1138 = vld [vmem:[#allocation2 + $0x48] sm:$0x7f]
        %v1139 = vld [vmem:[#allocation2 + $0x50] sm:$0x7f]
        %v1140 = vpack.c.bf16 %v1134, %v1132
        %v1141 = vpack.c.bf16 %v1135, %v1133
        %v1142 = vpack.c.bf16 %v1138, %v1136
        %v1143 = vpack.c.bf16 %v1139, %v1137
        %s1144 = scalar_lea.vmem %s1, 648
        %v1145 = vld [vmem:[%s1144] sm:$0xf]
        %v1146 = vld [vmem:[%s1144 + $0x4] sm:$0xf]
        %v1147 = vld [vmem:[%s1144 + $0x8] sm:$0xf]
        %v1148 = vld [vmem:[%s1144 + $0xc] sm:$0xf]
        %v1149 = vld [vmem:[%s1144 + $0x10] sm:$0xf]
        %v1150 = vld [vmem:[%s1144 + $0x14] sm:$0xf]
        %v1151 = vld [vmem:[%s1144 + $0x18] sm:$0xf]
        %v1152 = vld [vmem:[%s1144 + $0x1c] sm:$0xf]
        %v1153 = vld [vmem:[%s1144 + $0x20] sm:$0xf]
        %v1154 = vld [vmem:[%s1144 + $0x24] sm:$0xf]
        %v1155 = vld [vmem:[%s1144 + $0x28] sm:$0xf]
        %v1156 = vld [vmem:[%s1144 + $0x2c] sm:$0xf]
        %v1157 = vld [vmem:[%s1144 + $0x30] sm:$0xf]
        %v1158 = vld [vmem:[%s1144 + $0x34] sm:$0xf]
        %v1159 = vld [vmem:[%s1144 + $0x38] sm:$0xf]
        %v1160 = vld [vmem:[%s1144 + $0x3c] sm:$0xf]
        %v1161 = vld [vmem:[%s1144 + $0x40] sm:$0xf]
        %v1162 = vld [vmem:[%s1144 + $0x44] sm:$0xf]
        %v1163 = vld [vmem:[%s1144 + $0x48] sm:$0xf]
        %v1164 = vld [vmem:[%s1144 + $0x4c] sm:$0xf]
        %v1165 = vld [vmem:[%s1144 + $0x50] sm:$0xf]
        %v1166 = vld [vmem:[%s1144 + $0x54] sm:$0xf]
        %v1167 = vld [vmem:[%s1144 + $0x58] sm:$0xf]
        %v1168 = vld [vmem:[%s1144 + $0x5c] sm:$0xf]
        %v1169 = vld [vmem:[%s1144 + $0x60] sm:$0xf]
        %v1170 = vld [vmem:[%s1144 + $0x64] sm:$0xf]
        %v1171 = vld [vmem:[%s1144 + $0x68] sm:$0xf]
        %v1172 = vld [vmem:[#allocation2 + $0x48] sm:$0xff]
        %v1173 = vld [vmem:[#allocation2 + $0x50] sm:$0xff]
        %v1174 = vpack.c.bf16 %v1136, %v1134
        %v1175 = vpack.c.bf16 %v1137, %v1135
        %v1176 = vpack.c.bf16 %v1172, %v1172
        %v1177 = vpack.c.bf16 %v1173, %v1173
        %s1178 = scalar_lea.vmem %s1, 756
        %v1179 = vld [vmem:[%s1178] sm:$0xf]
        %v1180 = vld [vmem:[%s1178 + $0x4] sm:$0xf]
        %v1181 = vld [vmem:[%s1178 + $0x8] sm:$0xf]
        %v1182 = vld [vmem:[%s1178 + $0xc] sm:$0xf]
        %v1183 = vld [vmem:[%s1178 + $0x10] sm:$0xf]
        %v1184 = vld [vmem:[%s1178 + $0x14] sm:$0xf]
        %v1185 = vld [vmem:[%s1178 + $0x18] sm:$0xf]
        %v1186 = vld [vmem:[%s1178 + $0x1c] sm:$0xf]
        %v1187 = vld [vmem:[%s1178 + $0x20] sm:$0xf]
        %v1188 = vld [vmem:[%s1178 + $0x24] sm:$0xf]
        %v1189 = vld [vmem:[%s1178 + $0x28] sm:$0xf]
        %v1190 = vld [vmem:[%s1178 + $0x2c] sm:$0xf]
        %v1191 = vld [vmem:[%s1178 + $0x30] sm:$0xf]
        %v1192 = vld [vmem:[%s1178 + $0x34] sm:$0xf]
        %v1193 = vld [vmem:[%s1178 + $0x38] sm:$0xf]
        %v1194 = vld [vmem:[%s1178 + $0x3c] sm:$0xf]
        %v1195 = vld [vmem:[%s1178 + $0x40] sm:$0xf]
        %v1196 = vld [vmem:[%s1178 + $0x44] sm:$0xf]
        %v1197 = vld [vmem:[%s1178 + $0x48] sm:$0xf]
        %v1198 = vld [vmem:[%s1178 + $0x4c] sm:$0xf]
        %v1199 = vld [vmem:[%s1178 + $0x50] sm:$0xf]
        %v1200 = vld [vmem:[%s1178 + $0x54] sm:$0xf]
        %v1201 = vld [vmem:[%s1178 + $0x58] sm:$0xf]
        %v1202 = vld [vmem:[%s1178 + $0x5c] sm:$0xf]
        %v1203 = vld [vmem:[%s1178 + $0x60] sm:$0xf]
        %v1204 = vld [vmem:[%s1178 + $0x64] sm:$0xf]
        %v1205 = vld [vmem:[%s1178 + $0x68] sm:$0xf]
        %v1233 = vunpack.c.l.b16 %v1179
        %v1234 = vunpack.c.l.b16 %v1180
        %v1235 = vunpack.c.l.b16 %v1181
        %v1236 = vunpack.c.l.b16 %v1182
        %v1237 = vunpack.c.l.b16 %v1183
        %v1238 = vunpack.c.l.b16 %v1184
        %v1239 = vunpack.c.l.b16 %v1185
        %v1240 = vunpack.c.l.b16 %v1186
        %v1241 = vunpack.c.l.b16 %v1187
        %v1242 = vunpack.c.l.b16 %v1188
        %v1243 = vunpack.c.l.b16 %v1189
        %v1244 = vunpack.c.l.b16 %v1190
        %v1245 = vunpack.c.l.b16 %v1191
        %v1246 = vunpack.c.l.b16 %v1192
        %v1247 = vunpack.c.l.b16 %v1193
        %v1248 = vunpack.c.l.b16 %v1194
        %v1249 = vunpack.c.l.b16 %v1195
        %v1250 = vunpack.c.l.b16 %v1196
        %v1251 = vunpack.c.l.b16 %v1197
        %v1252 = vunpack.c.l.b16 %v1198
        %v1253 = vunpack.c.l.b16 %v1199
        %v1254 = vunpack.c.l.b16 %v1200
        %v1255 = vunpack.c.l.b16 %v1201
        %v1256 = vunpack.c.l.b16 %v1202
        %v1257 = vunpack.c.l.b16 %v1203
        %v1258 = vunpack.c.l.b16 %v1204
        %v1259 = vunpack.c.l.b16 %v1205
        %v1260 = vpack.c.b16 %v1234, %v1233
        %v1261 = vpack.c.b16 %v1236, %v1235
        %v1262 = vpack.c.b16 %v1238, %v1237
        %v1263 = vpack.c.b16 %v1240, %v1239
        %v1264 = vpack.c.b16 %v1242, %v1241
        %v1265 = vpack.c.b16 %v1244, %v1243
        %v1266 = vpack.c.b16 %v1246, %v1245
        %v1267 = vpack.c.b16 %v1248, %v1247
        %v1268 = vpack.c.b16 %v1250, %v1249
        %v1269 = vpack.c.b16 %v1252, %v1251
        %v1270 = vpack.c.b16 %v1254, %v1253
        %v1271 = vpack.c.b16 %v1256, %v1255
        %v1272 = vpack.c.b16 %v1258, %v1257
        %v1273 = vpack.c.b16 %v1259, %v1259
        %vm1287 = vcmask 719872
        %v1289 = vsel %vm1287, %v1175, 0
        %v1292 = vsel %vm1287, %v1177, 0
        %v1295 = vsel %vm293, %v1273, 0
        %1297 = vmatprep.subr.bf16.mxu0 0
        %1298 = vmatpush1.bf16.msra.mxu0 %v1267
        %1299 = vmatprep.subr.bf16.mxu0 0
        %1300 = vmatpush1.bf16.msra.mxu0 %v1266
        %1301 = vmatprep.subr.bf16.mxu0 0
        %1302 = vmatpush1.bf16.msra.mxu0 %v1265
        %1303 = vmatprep.subr.bf16.mxu0 0
        %1304 = vmatpush1.bf16.msra.mxu0 %v1264
        %1305 = vmatprep.subr.bf16.mxu0 0
        %1306 = vmatpush1.bf16.msra.mxu0 %v1263
        %1307 = vmatprep.subr.bf16.mxu0 0
        %1308 = vmatpush1.bf16.msra.mxu0 %v1262
        %1309 = vmatprep.subr.bf16.mxu0 0
        %1310 = vmatpush1.bf16.msra.mxu0 %v1261
        %1311 = vmatprep.subr.bf16.mxu0 0
        %1312 = vmatpush1.bf16.msra.mxu0 %v1260
        %1313 = vmatprep.subr.bf16.mxu0 0
        %1314 = vmatpush2.bf16.msra.mxu0 0
        %1315 = vmatprep.subr.bf16.mxu0 0
        %1316 = vmatpush2.bf16.msra.mxu0 0
        %1317 = vmatprep.subr.bf16.mxu0 0
        %1318 = vmatpush2.bf16.msra.mxu0 %v1295
        %1319 = vmatprep.subr.bf16.mxu0 0
        %1320 = vmatpush2.bf16.msra.mxu0 %v1272
        %1321 = vmatprep.subr.bf16.mxu0 0
        %1322 = vmatpush2.bf16.msra.mxu0 %v1271
        %1323 = vmatprep.subr.bf16.mxu0 0
        %1324 = vmatpush2.bf16.msra.mxu0 %v1270
        %1325 = vmatprep.subr.bf16.mxu0 0
        %1326 = vmatpush2.bf16.msra.mxu0 %v1269
        %1327 = vmatprep.subr.bf16.mxu0 0
        %1328 = vmatpush2.bf16.msra.mxu0 %v1268
        %1329 = vmatprep.mubr.bf16.mxu0 %v1289
        %1330 = vmatmul.mubr.bf16.gmra.mxu0 %v1174
        %v1331 = vpop.f32.mrf.mxu0
        %v1332 = vadd.f32 0.0, %v1331
        %v1333 = vpop.f32.mrf.mxu0
        %v1334 = vpop.f32.mrf.mxu0
        %v1335 = vadd.f32 0.0, %v1334
        %v1336 = vpop.f32.mrf.mxu0
        %1337 = vmatprep.mubr.bf16.mxu0 %v1292
        %1338 = vmatmul.mubr.bf16.gmra.mxu0 %v1176
        %v1339 = vpop.f32.mrf.mxu0
        %v1340 = vadd.f32 0.0, %v1339
        %v1341 = vpop.f32.mrf.mxu0
        %v1342 = vpop.f32.mrf.mxu0
        %v1343 = vpop.f32.mrf.mxu0
        %1344 = vdwg.mxu0
        %v1346 = vshrl.u32 %v1140, 16
        %v1348 = vrot.slane %v1346, 3
        %v1349 = vshll.u32 %v1140, 16
        %v1351 = vrot.slane %v1349, 4
        %v1352 = vor.u32 %v1348, %v1351
        %v1354 = vshrl.u32 %v1142, 16
        %v1356 = vrot.slane %v1354, 3
        %v1357 = vshll.u32 %v1142, 16
        %v1359 = vrot.slane %v1357, 4
        %v1360 = vor.u32 %v1356, %v1359
        %v1361 = vsel %vm345, %v1352, %v1360
        %v1363 = vshrl.u32 %v1141, 16
        %v1365 = vrot.slane %v1363, 3
        %v1366 = vshll.u32 %v1141, 16
        %v1368 = vrot.slane %v1366, 4
        %v1369 = vor.u32 %v1365, %v1368
        %v1371 = vshrl.u32 %v1143, 16
        %v1373 = vrot.slane %v1371, 3
        %v1374 = vshll.u32 %v1143, 16
        %v1376 = vrot.slane %v1374, 4
        %v1377 = vor.u32 %v1373, %v1376
        %v1378 = vsel %vm345, %v1369, %v1377
        %v1408 = vunpack.c.l.b16 %v1145
        %v1409 = vunpack.c.l.b16 %v1146
        %v1410 = vunpack.c.l.b16 %v1147
        %v1411 = vunpack.c.l.b16 %v1148
        %v1412 = vunpack.c.l.b16 %v1149
        %v1413 = vunpack.c.l.b16 %v1150
        %v1414 = vunpack.c.l.b16 %v1151
        %v1415 = vunpack.c.l.b16 %v1152
        %v1416 = vunpack.c.l.b16 %v1153
        %v1417 = vunpack.c.l.b16 %v1154
        %v1418 = vunpack.c.l.b16 %v1155
        %v1419 = vunpack.c.l.b16 %v1156
        %v1420 = vunpack.c.l.b16 %v1157
        %v1421 = vunpack.c.l.b16 %v1158
        %v1422 = vunpack.c.l.b16 %v1159
        %v1423 = vunpack.c.l.b16 %v1160
        %v1424 = vunpack.c.l.b16 %v1161
        %v1425 = vunpack.c.l.b16 %v1162
        %v1426 = vunpack.c.l.b16 %v1163
        %v1427 = vunpack.c.l.b16 %v1164
        %v1428 = vunpack.c.l.b16 %v1165
        %v1429 = vunpack.c.l.b16 %v1166
        %v1430 = vunpack.c.l.b16 %v1167
        %v1431 = vunpack.c.l.b16 %v1168
        %v1432 = vunpack.c.l.b16 %v1169
        %v1433 = vunpack.c.l.b16 %v1170
        %v1434 = vunpack.c.l.b16 %v1171
        %v1435 = vpack.c.b16 %v1409, %v1408
        %v1436 = vpack.c.b16 %v1411, %v1410
        %v1437 = vpack.c.b16 %v1413, %v1412
        %v1438 = vpack.c.b16 %v1415, %v1414
        %v1439 = vpack.c.b16 %v1417, %v1416
        %v1440 = vpack.c.b16 %v1419, %v1418
        %v1441 = vpack.c.b16 %v1421, %v1420
        %v1442 = vpack.c.b16 %v1423, %v1422
        %v1443 = vpack.c.b16 %v1425, %v1424
        %v1444 = vpack.c.b16 %v1427, %v1426
        %v1445 = vpack.c.b16 %v1429, %v1428
        %v1446 = vpack.c.b16 %v1431, %v1430
        %v1447 = vpack.c.b16 %v1433, %v1432
        %v1448 = vpack.c.b16 %v1434, %v1434
        %v1463 = vsel %vm1287, %v1378, 0
        %v1466 = vsel %vm1287, %v1377, 0
        %v1469 = vsel %vm293, %v1448, 0
        %1471 = vmatprep.subr.bf16.mxu0 0
        %1472 = vmatpush1.bf16.msra.mxu0 %v1442
        %1473 = vmatprep.subr.bf16.mxu0 0
        %1474 = vmatpush1.bf16.msra.mxu0 %v1441
        %1475 = vmatprep.subr.bf16.mxu0 0
        %1476 = vmatpush1.bf16.msra.mxu0 %v1440
        %1477 = vmatprep.subr.bf16.mxu0 0
        %1478 = vmatpush1.bf16.msra.mxu0 %v1439
        %1479 = vmatprep.subr.bf16.mxu0 0
        %1480 = vmatpush1.bf16.msra.mxu0 %v1438
        %1481 = vmatprep.subr.bf16.mxu0 0
        %1482 = vmatpush1.bf16.msra.mxu0 %v1437
        %1483 = vmatprep.subr.bf16.mxu0 0
        %1484 = vmatpush1.bf16.msra.mxu0 %v1436
        %1485 = vmatprep.subr.bf16.mxu0 0
        %1486 = vmatpush1.bf16.msra.mxu0 %v1435
        %1487 = vmatprep.subr.bf16.mxu0 0
        %1488 = vmatpush2.bf16.msra.mxu0 0
        %1489 = vmatprep.subr.bf16.mxu0 0
        %1490 = vmatpush2.bf16.msra.mxu0 0
        %1491 = vmatprep.subr.bf16.mxu0 0
        %1492 = vmatpush2.bf16.msra.mxu0 %v1469
        %1493 = vmatprep.subr.bf16.mxu0 0
        %1494 = vmatpush2.bf16.msra.mxu0 %v1447
        %1495 = vmatprep.subr.bf16.mxu0 0
        %1496 = vmatpush2.bf16.msra.mxu0 %v1446
        %1497 = vmatprep.subr.bf16.mxu0 0
        %1498 = vmatpush2.bf16.msra.mxu0 %v1445
        %1499 = vmatprep.subr.bf16.mxu0 0
        %1500 = vmatpush2.bf16.msra.mxu0 %v1444
        %1501 = vmatprep.subr.bf16.mxu0 0
        %1502 = vmatpush2.bf16.msra.mxu0 %v1443
        %1503 = vmatprep.mubr.bf16.mxu0 %v1463
        %1504 = vmatmul.mubr.bf16.gmra.mxu0 %v1361
        %v1505 = vpop.f32.mrf.mxu0
        %v1506 = vadd.f32 %v1332, %v1505
        %v1507 = vpop.f32.mrf.mxu0
        %v1508 = vpop.f32.mrf.mxu0
        %v1509 = vadd.f32 %v1335, %v1508
        %v1510 = vpop.f32.mrf.mxu0
        %1511 = vmatprep.mubr.bf16.mxu0 %v1466
        %1512 = vmatmul.mubr.bf16.gmra.mxu0 %v1360
        %v1513 = vpop.f32.mrf.mxu0
        %v1514 = vadd.f32 %v1340, %v1513
        %v1515 = vpop.f32.mrf.mxu0
        %v1516 = vpop.f32.mrf.mxu0
        %v1517 = vpop.f32.mrf.mxu0
        %1518 = vdwg.mxu0
        %v1519 = vld [vmem:[#allocation2 + $0x18] sm:$0xfe]
        %v1520 = vld [vmem:[#allocation2 + $0x20] sm:$0xfe]
        %v1521 = vld [vmem:[#allocation2 + $0x30] sm:$0xff]
        %v1522 = vld [vmem:[#allocation2 + $0x38] sm:$0xff]
        %v1523 = vld [vmem:[#allocation2 + $0x48] sm:$0xff]
        %v1524 = vld [vmem:[#allocation2 + $0x50] sm:$0xff]
        %v1525 = vld [vmem:[#allocation2 + $0x60] sm:$0x1]
        %v1526 = vld [vmem:[#allocation2 + $0x68] sm:$0x1]
        %v1527 = vpack.c.bf16 %v1521, %v1519
        %v1528 = vpack.c.bf16 %v1522, %v1520
        %v1529 = vpack.c.bf16 %v1525, %v1523
        %v1530 = vpack.c.bf16 %v1526, %v1524
        %s1531 = scalar_lea.vmem %s1, 864
        %v1532 = vld [vmem:[%s1531] sm:$0xf]
        %v1533 = vld [vmem:[%s1531 + $0x4] sm:$0xf]
        %v1534 = vld [vmem:[%s1531 + $0x8] sm:$0xf]
        %v1535 = vld [vmem:[%s1531 + $0xc] sm:$0xf]
        %v1536 = vld [vmem:[%s1531 + $0x10] sm:$0xf]
        %v1537 = vld [vmem:[%s1531 + $0x14] sm:$0xf]
        %v1538 = vld [vmem:[%s1531 + $0x18] sm:$0xf]
        %v1539 = vld [vmem:[%s1531 + $0x1c] sm:$0xf]
        %v1540 = vld [vmem:[%s1531 + $0x20] sm:$0xf]
        %v1541 = vld [vmem:[%s1531 + $0x24] sm:$0xf]
        %v1542 = vld [vmem:[%s1531 + $0x28] sm:$0xf]
        %v1543 = vld [vmem:[%s1531 + $0x2c] sm:$0xf]
        %v1544 = vld [vmem:[%s1531 + $0x30] sm:$0xf]
        %v1545 = vld [vmem:[%s1531 + $0x34] sm:$0xf]
        %v1546 = vld [vmem:[%s1531 + $0x38] sm:$0xf]
        %v1547 = vld [vmem:[%s1531 + $0x3c] sm:$0xf]
        %v1548 = vld [vmem:[%s1531 + $0x40] sm:$0xf]
        %v1549 = vld [vmem:[%s1531 + $0x44] sm:$0xf]
        %v1550 = vld [vmem:[%s1531 + $0x48] sm:$0xf]
        %v1551 = vld [vmem:[%s1531 + $0x4c] sm:$0xf]
        %v1552 = vld [vmem:[%s1531 + $0x50] sm:$0xf]
        %v1553 = vld [vmem:[%s1531 + $0x54] sm:$0xf]
        %v1554 = vld [vmem:[%s1531 + $0x58] sm:$0xf]
        %v1555 = vld [vmem:[%s1531 + $0x5c] sm:$0xf]
        %v1556 = vld [vmem:[%s1531 + $0x60] sm:$0xf]
        %v1557 = vld [vmem:[%s1531 + $0x64] sm:$0xf]
        %v1558 = vld [vmem:[%s1531 + $0x68] sm:$0xf]
        %v1560 = vshrl.u32 %v1527, 16
        %v1562 = vshll.u32 %v1527, 16
        %v1564 = vrot.slane %v1562, 1
        %v1565 = vor.u32 %v1560, %v1564
        %v1567 = vshll.u32 %v1529, 16
        %v1569 = vrot.slane %v1567, 1
        %v1570 = vsel %vm463, %v1565, %v1569
        %v1572 = vshrl.u32 %v1528, 16
        %v1574 = vshll.u32 %v1528, 16
        %v1576 = vrot.slane %v1574, 1
        %v1577 = vor.u32 %v1572, %v1576
        %v1579 = vshll.u32 %v1530, 16
        %v1581 = vrot.slane %v1579, 1
        %v1582 = vsel %vm463, %v1577, %v1581
        %v1583 = vshrl.u32 %v1529, 16
        %v1585 = vor.u32 %v1583, %v1569
        %v1586 = vshrl.u32 %v1530, 16
        %v1588 = vor.u32 %v1586, %v1581
        %v1618 = vunpack.c.l.b16 %v1532
        %v1619 = vunpack.c.l.b16 %v1533
        %v1620 = vunpack.c.l.b16 %v1534
        %v1621 = vunpack.c.l.b16 %v1535
        %v1622 = vunpack.c.l.b16 %v1536
        %v1623 = vunpack.c.l.b16 %v1537
        %v1624 = vunpack.c.l.b16 %v1538
        %v1625 = vunpack.c.l.b16 %v1539
        %v1626 = vunpack.c.l.b16 %v1540
        %v1627 = vunpack.c.l.b16 %v1541
        %v1628 = vunpack.c.l.b16 %v1542
        %v1629 = vunpack.c.l.b16 %v1543
        %v1630 = vunpack.c.l.b16 %v1544
        %v1631 = vunpack.c.l.b16 %v1545
        %v1632 = vunpack.c.l.b16 %v1546
        %v1633 = vunpack.c.l.b16 %v1547
        %v1634 = vunpack.c.l.b16 %v1548
        %v1635 = vunpack.c.l.b16 %v1549
        %v1636 = vunpack.c.l.b16 %v1550
        %v1637 = vunpack.c.l.b16 %v1551
        %v1638 = vunpack.c.l.b16 %v1552
        %v1639 = vunpack.c.l.b16 %v1553
        %v1640 = vunpack.c.l.b16 %v1554
        %v1641 = vunpack.c.l.b16 %v1555
        %v1642 = vunpack.c.l.b16 %v1556
        %v1643 = vunpack.c.l.b16 %v1557
        %v1644 = vunpack.c.l.b16 %v1558
        %v1645 = vpack.c.b16 %v1619, %v1618
        %v1646 = vpack.c.b16 %v1621, %v1620
        %v1647 = vpack.c.b16 %v1623, %v1622
        %v1648 = vpack.c.b16 %v1625, %v1624
        %v1649 = vpack.c.b16 %v1627, %v1626
        %v1650 = vpack.c.b16 %v1629, %v1628
        %v1651 = vpack.c.b16 %v1631, %v1630
        %v1652 = vpack.c.b16 %v1633, %v1632
        %v1653 = vpack.c.b16 %v1635, %v1634
        %v1654 = vpack.c.b16 %v1637, %v1636
        %v1655 = vpack.c.b16 %v1639, %v1638
        %v1656 = vpack.c.b16 %v1641, %v1640
        %v1657 = vpack.c.b16 %v1643, %v1642
        %v1658 = vpack.c.b16 %v1644, %v1644
        %v1673 = vsel %vm1287, %v1582, 0
        %v1676 = vsel %vm1287, %v1588, 0
        %v1679 = vsel %vm293, %v1658, 0
        %1681 = vmatprep.subr.bf16.mxu0 0
        %1682 = vmatpush1.bf16.msra.mxu0 %v1652
        %1683 = vmatprep.subr.bf16.mxu0 0
        %1684 = vmatpush1.bf16.msra.mxu0 %v1651
        %1685 = vmatprep.subr.bf16.mxu0 0
        %1686 = vmatpush1.bf16.msra.mxu0 %v1650
        %1687 = vmatprep.subr.bf16.mxu0 0
        %1688 = vmatpush1.bf16.msra.mxu0 %v1649
        %1689 = vmatprep.subr.bf16.mxu0 0
        %1690 = vmatpush1.bf16.msra.mxu0 %v1648
        %1691 = vmatprep.subr.bf16.mxu0 0
        %1692 = vmatpush1.bf16.msra.mxu0 %v1647
        %1693 = vmatprep.subr.bf16.mxu0 0
        %1694 = vmatpush1.bf16.msra.mxu0 %v1646
        %1695 = vmatprep.subr.bf16.mxu0 0
        %1696 = vmatpush1.bf16.msra.mxu0 %v1645
        %1697 = vmatprep.subr.bf16.mxu0 0
        %1698 = vmatpush2.bf16.msra.mxu0 0
        %1699 = vmatprep.subr.bf16.mxu0 0
        %1700 = vmatpush2.bf16.msra.mxu0 0
        %1701 = vmatprep.subr.bf16.mxu0 0
        %1702 = vmatpush2.bf16.msra.mxu0 %v1679
        %1703 = vmatprep.subr.bf16.mxu0 0
        %1704 = vmatpush2.bf16.msra.mxu0 %v1657
        %1705 = vmatprep.subr.bf16.mxu0 0
        %1706 = vmatpush2.bf16.msra.mxu0 %v1656
        %1707 = vmatprep.subr.bf16.mxu0 0
        %1708 = vmatpush2.bf16.msra.mxu0 %v1655
        %1709 = vmatprep.subr.bf16.mxu0 0
        %1710 = vmatpush2.bf16.msra.mxu0 %v1654
        %1711 = vmatprep.subr.bf16.mxu0 0
        %1712 = vmatpush2.bf16.msra.mxu0 %v1653
        %1713 = vmatprep.mubr.bf16.mxu0 %v1673
        %1714 = vmatmul.mubr.bf16.gmra.mxu0 %v1570
        %v1715 = vpop.f32.mrf.mxu0
        %v1716 = vadd.f32 0.0, %v1715
        %v1717 = vpop.f32.mrf.mxu0
        %v1718 = vpop.f32.mrf.mxu0
        %v1719 = vadd.f32 0.0, %v1718
        %v1720 = vpop.f32.mrf.mxu0
        %1721 = vmatprep.mubr.bf16.mxu0 %v1676
        %1722 = vmatmul.mubr.bf16.gmra.mxu0 %v1585
        %v1723 = vpop.f32.mrf.mxu0
        %v1724 = vadd.f32 0.0, %v1723
        %v1725 = vpop.f32.mrf.mxu0
        %v1726 = vpop.f32.mrf.mxu0
        %v1727 = vpop.f32.mrf.mxu0
        %1728 = vdwg.mxu0
        %v1729 = vadd.f32 %v1506, %v1716
        %v1730 = vadd.f32 %v1509, %v1719
        %v1731 = vadd.f32 %v1514, %v1724
        %s1732 = scalar_lea.vmem %s2, 2
        %v1733 = vld [vmem:[%s1732] sm:$0x1]
        %v1735 = vlaneseq
        %v1736 = vshrl.u32 %v1735, 7
        %v1737 = vsub.s32 0, %v1736
        %v1738 = vrot.slane %v1733, %v1737
        %v1740 = vadd.f32 %v1729, %v1738
        %v1741 = vadd.f32 %v1730, %v1738
        %v1742 = vadd.f32 %v1731, %v1738
        %v1743 = vmax.f32 %v1740, 0.0
        %v1744 = vmax.f32 %v1741, 0.0
        %v1745 = vmax.f32 %v1742, 0.0
        %v1746 = vmul.f32 %v582, %v1743
        %v1747 = vmul.f32 %v587, %v1744
        %v1748 = vmul.f32 %v592, %v1745
        %1752 = vrot.lane.b32.xlu0 %v1746, 88
        %v1753 = vpop.permute.xlu0 %1752
        %1754 = vrot.lane.b32.xlu0 %v1747, 88
        %v1755 = vpop.permute.xlu0 %1754
        %1756 = vrot.lane.b32.xlu0 %v1748, 88
        %v1757 = vpop.permute.xlu0 %1756
        %vm1761 = vcmask 1048256
        %1762 = vst.msk [vmem:[#allocation2 + $0x20] sm:$0xff] %vm1761, %v1753
        %1763 = vst.msk [vmem:[#allocation2 + $0x28] sm:$0xff] %vm214, %v1753
        %1764 = vst.msk [vmem:[#allocation2 + $0x38] sm:$0xff] %vm1761, %v1755
        %1765 = vst.msk [vmem:[#allocation2 + $0x40] sm:$0xff] %vm214, %v1755
        %1766 = vst.msk [vmem:[#allocation2 + $0x50] sm:$0xff] %vm1761, %v1757
        %1767 = vst.msk [vmem:[#allocation2 + $0x58] sm:$0xff] %vm214, %v1757
        %v1768 = vld [vmem:[#allocation2 + $0x18] sm:$0xff]
        %v1769 = vld [vmem:[#allocation2 + $0x20] sm:$0xff]
        %v1770 = vld [vmem:[#allocation2 + $0x28] sm:$0xff]
        %v1771 = vld [vmem:[#allocation2 + $0x30] sm:$0xff]
        %v1772 = vld [vmem:[#allocation2 + $0x38] sm:$0xff]
        %v1773 = vld [vmem:[#allocation2 + $0x40] sm:$0xff]
        %v1774 = vld [vmem:[#allocation2 + $0x48] sm:$0xff]
        %v1775 = vld [vmem:[#allocation2 + $0x50] sm:$0xff]
        %v1776 = vld [vmem:[#allocation2 + $0x58] sm:$0xff]
        %1777 = vst [vmem:[%s190] sm:$0xff] %v1768
        %1778 = vst [vmem:[%s190 + $0x8] sm:$0xff] %v1769
        %1779 = vst.msk [vmem:[%s190 + $0x10] sm:$0xff] %vm214, %v1770
        %1780 = vst [vmem:[%s190 + $0x18] sm:$0xff] %v1771
        %1781 = vst [vmem:[%s190 + $0x20] sm:$0xff] %v1772
        %1782 = vst.msk [vmem:[%s190 + $0x28] sm:$0xff] %vm214, %v1773
        %1783 = vst [vmem:[%s190 + $0x30] sm:$0xff] %v1774
        %1784 = vst [vmem:[%s190 + $0x38] sm:$0xff] %v1775
        %1785 = vst.msk [vmem:[%s190 + $0x40] sm:$0xff] %vm214, %v1776
        %s1786 = sand.u32 %s115, 1
        %s1787 = scalar_lea.sflag [#allocation4], %s1786
        %s1788 = sand.u32 %s115, 1
        %s1789 = smul.addr %s1788, 72
        %s1790 = scalar_lea.vmem [#allocation3], %s1789
        // Predicated region
        $region37: #{tpu_custom_call.1} parent=35 // pred_check
          %p1791 = pneg %p125
        $region38: #{tpu_custom_call.1} parent=35 // pred_check_branch
          %1793 = sbr.rel (%p1791) target = $region40
        $region39: #{tpu_custom_call.1} parent=35 // pred_region
          %s1795 = ssub.s32 1152, 1152
          %1796 = vsyncadd %s1787, %s1795
          %s1797 = smul.addr %s18, 9
          %s1798 = smul.addr %s1797, 128
          %s1799 = scalar_lea.hbm %s4, %s1798
          %s1800 = sshll.u32 %s1790, 4
          %s1801 = int_to_ptr.vmem [resolvable:$true] %s1800
          %1806 = dma.vmem_to_hbm [thread:$0]  %s1801, 1152, %s1799, %s1787, 384, 384, 24
        $region40: #{tpu_custom_call.1} parent=35 // pred_fallthru
          _
      $region36: #{tpu_custom_call.1} parent=5 // pred_fallthru
        _
      %p1807 = scmp.le.s32.totalorder 2, %s13
      // Predicated region
      $region41: #{tpu_custom_call.1} parent=5 // pred_check
        %p1808 = pneg %p1807
      $region42: #{tpu_custom_call.1} parent=5 // pred_check_branch
        %1810 = sbr.rel (%p1808) target = $region44
      $region43: #{tpu_custom_call.1} parent=5 // pred_region
        %s1811 = ssub.s32 %s13, 2
        // Predicated region
        $region45: #{tpu_custom_call.1} parent=43 // pred_check
          %p1812 = pneg %p131
        $region46: #{tpu_custom_call.1} parent=43 // pred_check_branch
          %1814 = sbr.rel (%p1812) target = $region48
        $region47: #{tpu_custom_call.1} parent=43 // pred_region
          %s1815 = sand.u32 %s116, 1
          %s1816 = scalar_lea.sflag [#allocation4], %s1815
          %s1817 = sand.u32 %s116, 1
          %s1818 = smul.addr %s1817, 72
          %s1819 = scalar_lea.vmem [#allocation3], %s1818
          %1820 = dma.done %s1816, 1152
        $region48: #{tpu_custom_call.1} parent=43 // pred_fallthru
          _
      $region44: #{tpu_custom_call.1} parent=5 // pred_fallthru
        _
    $region6: #{tpu_custom_call.1} parent=1 // loop_footer
      %s17 = sadd.s32 1, %s13
    $region7: #{tpu_custom_call.1} parent=1 // loop_footer_branch
      %12 = sbr.rel target = $region3
    $region8: #{tpu_custom_call.1} parent=1 // loop_exit
      _
    %1821 = vsyncpa [#allocation4], 1
    %s1822 = scalar_lea.sflag [#allocation4], 1
    %1823 = vsyncpa %s1822, 1

</llo_original>
